<compile_context>
chip_gen: v5e
topology: v5e:2x2
jax: 0.10.0
libtpu: 0.0.40
codegen_flags: <defaults>
</compile_context>

<pallas_src>
import jax
import jax.numpy as jnp
from jax.experimental import pallas as pl
from jax.experimental.pallas import tpu as pltpu


# ----------------------------- fused GRU + head kernel -----------------------------

def fused_base_model_kernel(q_ref, v_ref,
                            wih_ref, whh_ref, gib_ref, bhhn_ref,
                            wq_ref, bq_ref, wv_ref, bv_ref,
                            w1_ref, b1_ref, b2_ref, w2_hbm,
                            out_ref,
                            gi_ref, w2_buf, dma_sem):
    T, Bb, Qp = q_ref.shape
    H = whh_ref.shape[0]
    G = 3 * H
    cdt = whh_ref.dtype               # matmul operand dtype (bf16 in production)
    f32 = jnp.float32

    Cp = out_ref.shape[1]
    CN = w2_buf.shape[2]
    n_chunks = Cp // CN

    def start_w2_fetch(j, slot):
        pltpu.make_async_copy(w2_hbm.at[:, pl.ds(j * CN, CN)],
                              w2_buf.at[slot], dma_sem.at[slot]).start()

    # Prefetch the first classifier weight chunk now so its HBM DMA overlaps the GRU.
    start_w2_fetch(0, 0)

    # ---- QuestionEmbedding: GRU, h0 = 0, PyTorch gate order (r, z, n) ----
    # Hoist the input projection off the serial chain: one 2D (T*Bb, Qp)@(Qp, 3H) matmul.
    # Bb is a multiple of 16, so the (T,Bb,Qp) <-> (T*Bb,Qp) merges are layout no-ops.
    x2 = q_ref[...].reshape(T * Bb, Qp)
    gi2 = jnp.dot(x2, wih_ref[...], preferred_element_type=f32) + gib_ref[...]
    # Time-major scratch: the per-step fetch below is a contiguous leading-axis load.
    gi_ref[...] = gi2.reshape(T, Bb, G)

    whh = whh_ref[...]
    # Hoist the bhh(n-gate) broadcast out of the serial loop (JAX does not CSE it).
    bhh_n = jnp.broadcast_to(bhhn_ref[...], (Bb, H))

    def gru_step(t, h):
        gi = gi_ref[t]                                                 # (Bb, 3H), f32
        gh = jnp.dot(h.astype(cdt), whh, preferred_element_type=f32)   # serial-path matmul
        # NOTE: at production num_hid (multiple of 128) these gate slices are lane-aligned.
        r = jax.nn.sigmoid(gi[:, 0:H] + gh[:, 0:H])                    # bih_r+bhh_r folded in gi
        z = jax.nn.sigmoid(gi[:, H:2 * H] + gh[:, H:2 * H])            # bih_z+bhh_z folded in gi
        n = jnp.tanh(gi[:, 2 * H:G] + r * (gh[:, 2 * H:G] + bhh_n))
        return (1.0 - z) * n + z * h                                   # h carry stays f32

    h = jax.lax.fori_loop(0, T, gru_step, jnp.zeros((Bb, H), f32), unroll=(T <= 8))

    # ---- q_net / v_net (weight_norm folded to dense) + elementwise join ----
    q_repr = jnp.maximum(
        jnp.dot(h.astype(cdt), wq_ref[...], preferred_element_type=f32) + bq_ref[...], 0.0)
    v_repr = jnp.maximum(
        jnp.dot(v_ref[...], wv_ref[...], preferred_element_type=f32) + bv_ref[...], 0.0)
    joint = q_repr * v_repr

    # ---- SimpleClassifier (Dropout is identity at inference) ----
    hid = jnp.maximum(
        jnp.dot(joint.astype(cdt), w1_ref[...], preferred_element_type=f32) + b1_ref[...], 0.0)
    hid_c = hid.astype(cdt)

    # Stream w2 from HBM in lane chunks with a double-buffered DMA (static unroll over
    # a handful of chunks), so the largest weight is never fully resident in VMEM (v7x).
    for j in range(n_chunks):
        slot = j % 2
        pltpu.make_async_copy(w2_hbm.at[:, pl.ds(j * CN, CN)],
                              w2_buf.at[slot], dma_sem.at[slot]).wait()
        if j + 1 < n_chunks:
            start_w2_fetch(j + 1, 1 - slot)
        out_ref[:, j * CN:(j + 1) * CN] = (
            jnp.dot(hid_c, w2_buf[slot], preferred_element_type=f32)
            + b2_ref[:, j * CN:(j + 1) * CN])


# ----------------------------------- helpers -----------------------------------

def _round_up(x, m):
    return ((x + m - 1) // m) * m


def _pick_cls_chunk(cp):
    # cp is a multiple of 128; pick a lane chunk <= 512 that divides it.
    for cn in (512, 384, 256, 128):
        if cp % cn == 0:
            return cn
    return cp


def _vmem_limit_bytes():
    # v5e/v6e: 128 MiB physical -> ~100 MB scoped; v7x: 64 MiB physical -> ~56 MB.
    try:
        cap = pltpu.get_tpu_info().vmem_capacity_bytes
    except Exception:
        cap = 64 * 1024 * 1024
    return int(min(cap - 8 * 1024 * 1024, 100 * 1024 * 1024))


def _weight_spec(shape):
    # Grid-invariant operand (constant index map): single-buffer it — double-buffering a
    # block whose index never changes buys zero overlap but doubles its VMEM footprint.
    n = len(shape)

    def index_map(i):
        return (0,) * n

    try:
        return pl.BlockSpec(shape, index_map, pipeline_mode=pl.Buffered(1))
    except (TypeError, AttributeError):   # older Pallas without pipeline_mode
        return pl.BlockSpec(shape, index_map)


# ----------------------------------- model wrapper -----------------------------------

def base_model_forward(v, q, params, *, matmul_dtype=jnp.bfloat16, b_block=None):
    """v: [B, V] image features; q: [B, T, Q] question word embeddings (batch-first)."""
    B, T, Q = q.shape
    V = v.shape[1]
    H = params["whh"].shape[0]
    H2 = params["w1"].shape[1]
    C = params["w2"].shape[1]

    f32 = jnp.float32
    cdt = matmul_dtype

    Qp = _round_up(Q, 128)       # 128-aligned contraction dim for the hoisted GRU matmul
    Cp = _round_up(C, 128)       # lane-dense classifier output; sliced back below
    CN = _pick_cls_chunk(Cp)     # classifier weight stream chunk (lanes)

    if b_block is None:
        # <=256 rows fills the MXU M dim; at real batch sizes this gives nb >= 2 so the
        # "parallel" grid axis can shard across v7x's two TensorCores (~128 rows on v5e).
        b_block = min(256, _round_up(B, 16))
    assert b_block % 16 == 0
    Bp = _round_up(B, b_block)   # pad ragged batches instead of asserting divisibility
    nb = Bp // b_block

    # Time-major question tensor, zero-padded batch / contraction dims, matmul dtype.
    q_t = jnp.pad(jnp.transpose(q, (1, 0, 2)).astype(cdt),
                  ((0, 0), (0, Bp - B), (0, Qp - Q)))
    v_p = jnp.pad(v.astype(cdt), ((0, Bp - B), (0, 0)))

    wih = jnp.pad(params["wih"].astype(cdt), ((0, Qp - Q), (0, 0)))
    whh = params["whh"].astype(cdt)
    bih = params["bih"].astype(f32)
    bhh = params["bhh"].astype(f32)
    # Fold bhh into the hoisted input-projection bias for the r/z gates; the n gate
    # needs bhh inside the r* product, so keep its slice separate.
    gib = (bih + jnp.concatenate([bhh[:2 * H], jnp.zeros((H,), f32)])).reshape(1, 3 * H)
    bhh_n = bhh[2 * H:].reshape(1, H)

    w2p = jnp.pad(params["w2"].astype(cdt), ((0, 0), (0, Cp - C)))
    b2p = jnp.pad(params["b2"].astype(f32), (0, Cp - C)).reshape(1, Cp)

    args = (
        q_t, v_p,
        wih, whh, gib, bhh_n,
        params["wq"].astype(cdt), params["bq"].astype(f32).reshape(1, H),
        params["wv"].astype(cdt), params["bv"].astype(f32).reshape(1, H),
        params["w1"].astype(cdt), params["b1"].astype(f32).reshape(1, H2),
        b2p,
        w2p,
    )

    in_specs = [
        pl.BlockSpec((T, b_block, Qp), lambda i: (0, i, 0)),   # per-batch-block question (time-major)
        pl.BlockSpec((b_block, V), lambda i: (i, 0)),          # per-batch-block image features
    ]
    in_specs += [_weight_spec(a.shape) for a in args[2:-1]]    # resident weights/biases
    in_specs += [pl.BlockSpec(memory_space=pl.ANY)]            # w2 stays in HBM, streamed in-kernel

    out = pl.pallas_call(
        fused_base_model_kernel,
        out_shape=jax.ShapeDtypeStruct((Bp, Cp), jnp.float32),
        grid=(nb,),
        in_specs=in_specs,
        out_specs=pl.BlockSpec((b_block, Cp), lambda i: (i, 0)),
        scratch_shapes=[
            pltpu.VMEM((T, b_block, 3 * H), jnp.float32),      # time-major gi scratch
            pltpu.VMEM((2, H2, CN), cdt),                      # w2 double buffer
            pltpu.SemaphoreType.DMA((2,)),
        ],
        compiler_params=pltpu.CompilerParams(
            dimension_semantics=("parallel",),                 # batch axis shards across TCs (v7x)
            vmem_limit_bytes=_vmem_limit_bytes()),
    )(*args)
    return out[:B, :C]


def init_params(key, q_dim, v_dim, num_hid, num_classes):
    def u(key, shape, fan_in):
        bound = 1.0 / jnp.sqrt(jnp.float32(fan_in))
        return jax.random.uniform(key, shape, jnp.float32, -bound, bound)

    ks = jax.random.split(key, 12)
    H, H2 = num_hid, num_hid * 2
    return {
        # GRU weights, already transposed to [in, 3H] / [H, 3H] (gate order r, z, n)
        "wih": u(ks[0], (q_dim, 3 * H), H),
        "whh": u(ks[1], (H, 3 * H), H),
        "bih": u(ks[2], (3 * H,), H),
        "bhh": u(ks[3], (3 * H,), H),
        # q_net / v_net (weight_norm -> effective dense weight)
        "wq": u(ks[4], (H, H), H), "bq": u(ks[5], (H,), H),
        "wv": u(ks[6], (v_dim, H), v_dim), "bv": u(ks[7], (H,), v_dim),
        # classifier
        "w1": u(ks[8], (H, H2), H), "b1": u(ks[9], (H2,), H),
        "w2": u(ks[10], (H2, num_classes), H2), "b2": u(ks[11], (num_classes,), H2),
    }


# ----------------------------------- pure-JAX reference -----------------------------------

def reference_forward(v, q, p):
    B, T, Q = q.shape
    H = p["whh"].shape[0]

    def step(h, x):
        gi = x @ p["wih"] + p["bih"]
        gh = h @ p["whh"] + p["bhh"]
        r = jax.nn.sigmoid(gi[:, :H] + gh[:, :H])
        z = jax.nn.sigmoid(gi[:, H:2 * H] + gh[:, H:2 * H])
        n = jnp.tanh(gi[:, 2 * H:] + r * gh[:, 2 * H:])
        return (1.0 - z) * n + z * h, None

    h0 = jnp.zeros((B, H), jnp.float32)
    q_emb, _ = jax.lax.scan(step, h0, jnp.transpose(q, (1, 0, 2)))
    q_repr = jax.nn.relu(q_emb @ p["wq"] + p["bq"])
    v_repr = jax.nn.relu(v @ p["wv"] + p["bv"])
    joint = q_repr * v_repr
    hid = jax.nn.relu(joint @ p["w1"] + p["b1"])
    return hid @ p["w2"] + p["b2"]


if __name__ == "__main__":
    B, T = 2, 8
    q_dim, v_dim, num_hid, num_classes = 16, 24, 32, 10

    key = jax.random.PRNGKey(0)
    k_v, k_q, k_p = jax.random.split(key, 3)
    v = jax.random.normal(k_v, (B, v_dim), jnp.float32)        # image features
    q = jax.random.normal(k_q, (B, T, q_dim), jnp.float32)     # question word embeddings
    params = init_params(k_p, q_dim, v_dim, num_hid, num_classes)

    ref = jax.block_until_ready(reference_forward(v, q, params))

    # f32 matmul path: directly comparable against the pure-JAX reference.
    logits_f32 = jax.block_until_ready(
        base_model_forward(v, q, params, matmul_dtype=jnp.float32))
    assert logits_f32.shape == (B, num_classes)
    assert jnp.allclose(logits_f32, ref, rtol=1e-5, atol=1e-5), "f32 Pallas output mismatch"

    # Production path: bf16 matmul operands, f32 accumulation + f32 gates/h carry.
    logits_bf16 = jax.block_until_ready(base_model_forward(v, q, params))
    assert logits_bf16.shape == (B, num_classes)
    assert jnp.allclose(logits_bf16, ref, rtol=5e-2, atol=5e-2), "bf16 Pallas output mismatch"

    print("KERNEL_OK")
</pallas_src>

<mosaic_0001>
module attributes {stable_mosaic.version = 11 : i64} {
  func.func @fused_base_model_kernel(%arg0: i32, %arg1: memref<8x16x128xf32, #tpu.memory_space<vmem>>, %arg2: memref<16x24xf32, #tpu.memory_space<vmem>>, %arg3: memref<128x96xf32, #tpu.memory_space<vmem>>, %arg4: memref<32x96xf32, #tpu.memory_space<vmem>>, %arg5: memref<1x96xf32, #tpu.memory_space<vmem>>, %arg6: memref<1x32xf32, #tpu.memory_space<vmem>>, %arg7: memref<32x32xf32, #tpu.memory_space<vmem>>, %arg8: memref<1x32xf32, #tpu.memory_space<vmem>>, %arg9: memref<24x32xf32, #tpu.memory_space<vmem>>, %arg10: memref<1x32xf32, #tpu.memory_space<vmem>>, %arg11: memref<32x64xf32, #tpu.memory_space<vmem>>, %arg12: memref<1x64xf32, #tpu.memory_space<vmem>>, %arg13: memref<1x128xf32, #tpu.memory_space<vmem>>, %arg14: memref<64x128xf32, #tpu.memory_space<any>>, %arg15: memref<16x128xf32, #tpu.memory_space<vmem>>, %arg16: memref<8x16x96xf32, #tpu.memory_space<vmem>>, %arg17: memref<2x64x128xf32, #tpu.memory_space<vmem>>, %arg18: memref<2x!tpu.dma_semaphore, #tpu.memory_space<semaphore_mem>>) attributes {dimension_semantics = [#tpu.dimension_semantics<parallel>], iteration_bounds = array<i64: 1>, scalar_prefetch = 0 : i64, scratch_operands = 3 : i64, tpu.core_type = #tpu.core_type<tc>, window_params = [{transform_indices = @transform_0, window_bounds = array<i64: 8, 16, 128>}, {transform_indices = @transform_1, window_bounds = array<i64: 16, 24>}, {pipeline_mode = #tpu.pipeline_mode<synchronous>, transform_indices = @transform_2, window_bounds = array<i64: 128, 96>}, {pipeline_mode = #tpu.pipeline_mode<synchronous>, transform_indices = @transform_3, window_bounds = array<i64: 32, 96>}, {pipeline_mode = #tpu.pipeline_mode<synchronous>, transform_indices = @transform_4, window_bounds = array<i64: 1, 96>}, {pipeline_mode = #tpu.pipeline_mode<synchronous>, transform_indices = @transform_5, window_bounds = array<i64: 1, 32>}, {pipeline_mode = #tpu.pipeline_mode<synchronous>, transform_indices = @transform_6, window_bounds = array<i64: 32, 32>}, {pipeline_mode = #tpu.pipeline_mode<synchronous>, transform_indices = @transform_7, window_bounds = array<i64: 1, 32>}, {pipeline_mode = #tpu.pipeline_mode<synchronous>, transform_indices = @transform_8, window_bounds = array<i64: 24, 32>}, {pipeline_mode = #tpu.pipeline_mode<synchronous>, transform_indices = @transform_9, window_bounds = array<i64: 1, 32>}, {pipeline_mode = #tpu.pipeline_mode<synchronous>, transform_indices = @transform_10, window_bounds = array<i64: 32, 64>}, {pipeline_mode = #tpu.pipeline_mode<synchronous>, transform_indices = @transform_11, window_bounds = array<i64: 1, 64>}, {pipeline_mode = #tpu.pipeline_mode<synchronous>, transform_indices = @transform_12, window_bounds = array<i64: 1, 128>}, {}, {transform_indices = @transform_14, window_bounds = array<i64: 16, 128>}]} {
    %c0_i32 = arith.constant 0 : i32
    %c0_i32_0 = arith.constant 0 : i32
    %c0_i32_1 = arith.constant 0 : i32
    %c0_i32_2 = arith.constant 0 : i32
    %0 = tpu.memref_slice %arg14[%c0_i32_1, %c0_i32_2] : memref<64x128xf32, #tpu.memory_space<any>> -> memref<64x128xf32, #tpu.memory_space<any>>
    %c0_i32_3 = arith.constant 0 : i32
    %c0_i32_4 = arith.constant 0 : i32
    %1 = tpu.memref_slice %arg17[%c0_i32, %c0_i32_3, %c0_i32_4] : memref<2x64x128xf32, #tpu.memory_space<vmem>> -> memref<1x64x128xf32, #tpu.memory_space<vmem>>
    %2 = tpu.memref_squeeze %1 : memref<1x64x128xf32, #tpu.memory_space<vmem>> -> memref<64x128xf32, #tpu.memory_space<vmem>>
    %3 = tpu.memref_slice %arg18[%c0_i32_0] : memref<2x!tpu.dma_semaphore, #tpu.memory_space<semaphore_mem>> -> memref<1x!tpu.dma_semaphore, #tpu.memory_space<semaphore_mem>>
    %4 = tpu.memref_squeeze %3 : memref<1x!tpu.dma_semaphore, #tpu.memory_space<semaphore_mem>> -> memref<!tpu.dma_semaphore, #tpu.memory_space<semaphore_mem>>
    tpu.enqueue_dma source(%0 : memref<64x128xf32, #tpu.memory_space<any>>) target(%2 : memref<64x128xf32, #tpu.memory_space<vmem>>) target_semaphore(%4 : memref<!tpu.dma_semaphore, #tpu.memory_space<semaphore_mem>>)
    %c0 = arith.constant 0 : index
    %c0_5 = arith.constant 0 : index
    %c0_6 = arith.constant 0 : index
    %5 = vector.load %arg1[%c0, %c0_5, %c0_6] : memref<8x16x128xf32, #tpu.memory_space<vmem>>, vector<8x16x128xf32>
    %6 = vector.shape_cast %5 : vector<8x16x128xf32> to vector<128x128xf32>
    %c0_7 = arith.constant 0 : index
    %c0_8 = arith.constant 0 : index
    %7 = vector.load %arg3[%c0_7, %c0_8] : memref<128x96xf32, #tpu.memory_space<vmem>>, vector<128x96xf32>
    %cst = arith.constant dense<0.000000e+00> : vector<128x96xf32>
    %8 = tpu.matmul %6, %7, %cst {dimension_numbers = #tpu.dot_dimension_numbers<[1], [0], [0], [1], [0, 0, 1, 1], [], []>} : vector<128x128xf32>, vector<128x96xf32>, vector<128x96xf32> -> vector<128x96xf32>
    %c0_9 = arith.constant 0 : index
    %c0_10 = arith.constant 0 : index
    %9 = vector.load %arg5[%c0_9, %c0_10] : memref<1x96xf32, #tpu.memory_space<vmem>>, vector<1x96xf32>
    %10 = vector.broadcast %9 : vector<1x96xf32> to vector<128x96xf32>
    %11 = arith.addf %8, %10 : vector<128x96xf32>
    %12 = vector.shape_cast %11 : vector<128x96xf32> to vector<8x16x96xf32>
    %c0_11 = arith.constant 0 : index
    %c0_12 = arith.constant 0 : index
    %c0_13 = arith.constant 0 : index
    %13 = vector.load %arg16[%c0_11, %c0_12, %c0_13] : memref<8x16x96xf32, #tpu.memory_space<vmem>>, vector<8x16x96xf32>
    tpu.vector_store %arg16[%c0_11, %c0_12, %c0_13], %12 {strides = array<i32>} : memref<8x16x96xf32, #tpu.memory_space<vmem>>, vector<8x16x96xf32>,
    %c0_14 = arith.constant 0 : index
    %c0_15 = arith.constant 0 : index
    %14 = vector.load %arg4[%c0_14, %c0_15] : memref<32x96xf32, #tpu.memory_space<vmem>>, vector<32x96xf32>
    %c0_16 = arith.constant 0 : index
    %c0_17 = arith.constant 0 : index
    %15 = vector.load %arg6[%c0_16, %c0_17] : memref<1x32xf32, #tpu.memory_space<vmem>>, vector<1x32xf32>
    %16 = vector.shape_cast %15 : vector<1x32xf32> to vector<1x32xf32>
    %17 = vector.broadcast %16 : vector<1x32xf32> to vector<16x32xf32>
    %cst_18 = arith.constant 0.000000e+00 : f32
    %18 = vector.broadcast %cst_18 : f32 to vector<16x32xf32>
    %c0_i32_19 = arith.constant 0 : i32
    %19 = arith.index_cast %c0_i32_19 : i32 to index
    %c0_20 = arith.constant 0 : index
    %c0_21 = arith.constant 0 : index
    %20 = vector.load %arg16[%19, %c0_20, %c0_21] : memref<8x16x96xf32, #tpu.memory_space<vmem>>, vector<1x16x96xf32>
    %21 = vector.shape_cast %20 : vector<1x16x96xf32> to vector<16x96xf32>
    %cst_22 = arith.constant dense<0.000000e+00> : vector<16x96xf32>
    %22 = tpu.matmul %18, %14, %cst_22 {dimension_numbers = #tpu.dot_dimension_numbers<[1], [0], [0], [1], [0, 0, 1, 1], [], []>} : vector<16x32xf32>, vector<32x96xf32>, vector<16x96xf32> -> vector<16x96xf32>
    %23 = vector.extract_strided_slice %21 {offsets = [0, 0], sizes = [16, 32], strides = [1, 1]} : vector<16x96xf32> to vector<16x32xf32>
    %24 = vector.extract_strided_slice %22 {offsets = [0, 0], sizes = [16, 32], strides = [1, 1]} : vector<16x96xf32> to vector<16x32xf32>
    %25 = arith.addf %23, %24 : vector<16x32xf32>
    %26 = arith.negf %25 : vector<16x32xf32>
    %27 = math.exp %26 : vector<16x32xf32>
    %cst_23 = arith.constant 1.000000e+00 : f32
    %28 = vector.broadcast %cst_23 : f32 to vector<16x32xf32>
    %29 = arith.addf %28, %27 : vector<16x32xf32>
    %30 = arith.divf %28, %29 : vector<16x32xf32>
    %31 = vector.extract_strided_slice %21 {offsets = [0, 32], sizes = [16, 32], strides = [1, 1]} : vector<16x96xf32> to vector<16x32xf32>
    %32 = vector.extract_strided_slice %22 {offsets = [0, 32], sizes = [16, 32], strides = [1, 1]} : vector<16x96xf32> to vector<16x32xf32>
    %33 = arith.addf %31, %32 : vector<16x32xf32>
    %34 = arith.negf %33 : vector<16x32xf32>
    %35 = math.exp %34 : vector<16x32xf32>
    %cst_24 = arith.constant 1.000000e+00 : f32
    %36 = vector.broadcast %cst_24 : f32 to vector<16x32xf32>
    %37 = arith.addf %36, %35 : vector<16x32xf32>
    %38 = arith.divf %36, %37 : vector<16x32xf32>
    %39 = vector.extract_strided_slice %21 {offsets = [0, 64], sizes = [16, 32], strides = [1, 1]} : vector<16x96xf32> to vector<16x32xf32>
    %40 = vector.extract_strided_slice %22 {offsets = [0, 64], sizes = [16, 32], strides = [1, 1]} : vector<16x96xf32> to vector<16x32xf32>
    %41 = arith.addf %40, %17 : vector<16x32xf32>
    %42 = arith.mulf %30, %41 : vector<16x32xf32>
    %43 = arith.addf %39, %42 : vector<16x32xf32>
    %44 = math.tanh %43 : vector<16x32xf32>
    %cst_25 = arith.constant 1.000000e+00 : f32
    %45 = vector.broadcast %cst_25 : f32 to vector<16x32xf32>
    %46 = arith.subf %45, %38 : vector<16x32xf32>
    %47 = arith.mulf %46, %44 : vector<16x32xf32>
    %48 = arith.mulf %38, %18 : vector<16x32xf32>
    %49 = arith.addf %47, %48 : vector<16x32xf32>
    %c1_i32 = arith.constant 1 : i32
    %50 = arith.index_cast %c1_i32 : i32 to index
    %c0_26 = arith.constant 0 : index
    %c0_27 = arith.constant 0 : index
    %51 = vector.load %arg16[%50, %c0_26, %c0_27] : memref<8x16x96xf32, #tpu.memory_space<vmem>>, vector<1x16x96xf32>
    %52 = vector.shape_cast %51 : vector<1x16x96xf32> to vector<16x96xf32>
    %cst_28 = arith.constant dense<0.000000e+00> : vector<16x96xf32>
    %53 = tpu.matmul %49, %14, %cst_28 {dimension_numbers = #tpu.dot_dimension_numbers<[1], [0], [0], [1], [0, 0, 1, 1], [], []>} : vector<16x32xf32>, vector<32x96xf32>, vector<16x96xf32> -> vector<16x96xf32>
    %54 = vector.extract_strided_slice %52 {offsets = [0, 0], sizes = [16, 32], strides = [1, 1]} : vector<16x96xf32> to vector<16x32xf32>
    %55 = vector.extract_strided_slice %53 {offsets = [0, 0], sizes = [16, 32], strides = [1, 1]} : vector<16x96xf32> to vector<16x32xf32>
    %56 = arith.addf %54, %55 : vector<16x32xf32>
    %57 = arith.negf %56 : vector<16x32xf32>
    %58 = math.exp %57 : vector<16x32xf32>
    %cst_29 = arith.constant 1.000000e+00 : f32
    %59 = vector.broadcast %cst_29 : f32 to vector<16x32xf32>
    %60 = arith.addf %59, %58 : vector<16x32xf32>
    %61 = arith.divf %59, %60 : vector<16x32xf32>
    %62 = vector.extract_strided_slice %52 {offsets = [0, 32], sizes = [16, 32], strides = [1, 1]} : vector<16x96xf32> to vector<16x32xf32>
    %63 = vector.extract_strided_slice %53 {offsets = [0, 32], sizes = [16, 32], strides = [1, 1]} : vector<16x96xf32> to vector<16x32xf32>
    %64 = arith.addf %62, %63 : vector<16x32xf32>
    %65 = arith.negf %64 : vector<16x32xf32>
    %66 = math.exp %65 : vector<16x32xf32>
    %cst_30 = arith.constant 1.000000e+00 : f32
    %67 = vector.broadcast %cst_30 : f32 to vector<16x32xf32>
    %68 = arith.addf %67, %66 : vector<16x32xf32>
    %69 = arith.divf %67, %68 : vector<16x32xf32>
    %70 = vector.extract_strided_slice %52 {offsets = [0, 64], sizes = [16, 32], strides = [1, 1]} : vector<16x96xf32> to vector<16x32xf32>
    %71 = vector.extract_strided_slice %53 {offsets = [0, 64], sizes = [16, 32], strides = [1, 1]} : vector<16x96xf32> to vector<16x32xf32>
    %72 = arith.addf %71, %17 : vector<16x32xf32>
    %73 = arith.mulf %61, %72 : vector<16x32xf32>
    %74 = arith.addf %70, %73 : vector<16x32xf32>
    %75 = math.tanh %74 : vector<16x32xf32>
    %cst_31 = arith.constant 1.000000e+00 : f32
    %76 = vector.broadcast %cst_31 : f32 to vector<16x32xf32>
    %77 = arith.subf %76, %69 : vector<16x32xf32>
    %78 = arith.mulf %77, %75 : vector<16x32xf32>
    %79 = arith.mulf %69, %49 : vector<16x32xf32>
    %80 = arith.addf %78, %79 : vector<16x32xf32>
    %c2_i32 = arith.constant 2 : i32
    %81 = arith.index_cast %c2_i32 : i32 to index
    %c0_32 = arith.constant 0 : index
    %c0_33 = arith.constant 0 : index
    %82 = vector.load %arg16[%81, %c0_32, %c0_33] : memref<8x16x96xf32, #tpu.memory_space<vmem>>, vector<1x16x96xf32>
    %83 = vector.shape_cast %82 : vector<1x16x96xf32> to vector<16x96xf32>
    %cst_34 = arith.constant dense<0.000000e+00> : vector<16x96xf32>
    %84 = tpu.matmul %80, %14, %cst_34 {dimension_numbers = #tpu.dot_dimension_numbers<[1], [0], [0], [1], [0, 0, 1, 1], [], []>} : vector<16x32xf32>, vector<32x96xf32>, vector<16x96xf32> -> vector<16x96xf32>
    %85 = vector.extract_strided_slice %83 {offsets = [0, 0], sizes = [16, 32], strides = [1, 1]} : vector<16x96xf32> to vector<16x32xf32>
    %86 = vector.extract_strided_slice %84 {offsets = [0, 0], sizes = [16, 32], strides = [1, 1]} : vector<16x96xf32> to vector<16x32xf32>
    %87 = arith.addf %85, %86 : vector<16x32xf32>
    %88 = arith.negf %87 : vector<16x32xf32>
    %89 = math.exp %88 : vector<16x32xf32>
    %cst_35 = arith.constant 1.000000e+00 : f32
    %90 = vector.broadcast %cst_35 : f32 to vector<16x32xf32>
    %91 = arith.addf %90, %89 : vector<16x32xf32>
    %92 = arith.divf %90, %91 : vector<16x32xf32>
    %93 = vector.extract_strided_slice %83 {offsets = [0, 32], sizes = [16, 32], strides = [1, 1]} : vector<16x96xf32> to vector<16x32xf32>
    %94 = vector.extract_strided_slice %84 {offsets = [0, 32], sizes = [16, 32], strides = [1, 1]} : vector<16x96xf32> to vector<16x32xf32>
    %95 = arith.addf %93, %94 : vector<16x32xf32>
    %96 = arith.negf %95 : vector<16x32xf32>
    %97 = math.exp %96 : vector<16x32xf32>
    %cst_36 = arith.constant 1.000000e+00 : f32
    %98 = vector.broadcast %cst_36 : f32 to vector<16x32xf32>
    %99 = arith.addf %98, %97 : vector<16x32xf32>
    %100 = arith.divf %98, %99 : vector<16x32xf32>
    %101 = vector.extract_strided_slice %83 {offsets = [0, 64], sizes = [16, 32], strides = [1, 1]} : vector<16x96xf32> to vector<16x32xf32>
    %102 = vector.extract_strided_slice %84 {offsets = [0, 64], sizes = [16, 32], strides = [1, 1]} : vector<16x96xf32> to vector<16x32xf32>
    %103 = arith.addf %102, %17 : vector<16x32xf32>
    %104 = arith.mulf %92, %103 : vector<16x32xf32>
    %105 = arith.addf %101, %104 : vector<16x32xf32>
    %106 = math.tanh %105 : vector<16x32xf32>
    %cst_37 = arith.constant 1.000000e+00 : f32
    %107 = vector.broadcast %cst_37 : f32 to vector<16x32xf32>
    %108 = arith.subf %107, %100 : vector<16x32xf32>
    %109 = arith.mulf %108, %106 : vector<16x32xf32>
    %110 = arith.mulf %100, %80 : vector<16x32xf32>
    %111 = arith.addf %109, %110 : vector<16x32xf32>
    %c3_i32 = arith.constant 3 : i32
    %112 = arith.index_cast %c3_i32 : i32 to index
    %c0_38 = arith.constant 0 : index
    %c0_39 = arith.constant 0 : index
    %113 = vector.load %arg16[%112, %c0_38, %c0_39] : memref<8x16x96xf32, #tpu.memory_space<vmem>>, vector<1x16x96xf32>
    %114 = vector.shape_cast %113 : vector<1x16x96xf32> to vector<16x96xf32>
    %cst_40 = arith.constant dense<0.000000e+00> : vector<16x96xf32>
    %115 = tpu.matmul %111, %14, %cst_40 {dimension_numbers = #tpu.dot_dimension_numbers<[1], [0], [0], [1], [0, 0, 1, 1], [], []>} : vector<16x32xf32>, vector<32x96xf32>, vector<16x96xf32> -> vector<16x96xf32>
    %116 = vector.extract_strided_slice %114 {offsets = [0, 0], sizes = [16, 32], strides = [1, 1]} : vector<16x96xf32> to vector<16x32xf32>
    %117 = vector.extract_strided_slice %115 {offsets = [0, 0], sizes = [16, 32], strides = [1, 1]} : vector<16x96xf32> to vector<16x32xf32>
    %118 = arith.addf %116, %117 : vector<16x32xf32>
    %119 = arith.negf %118 : vector<16x32xf32>
    %120 = math.exp %119 : vector<16x32xf32>
    %cst_41 = arith.constant 1.000000e+00 : f32
    %121 = vector.broadcast %cst_41 : f32 to vector<16x32xf32>
    %122 = arith.addf %121, %120 : vector<16x32xf32>
    %123 = arith.divf %121, %122 : vector<16x32xf32>
    %124 = vector.extract_strided_slice %114 {offsets = [0, 32], sizes = [16, 32], strides = [1, 1]} : vector<16x96xf32> to vector<16x32xf32>
    %125 = vector.extract_strided_slice %115 {offsets = [0, 32], sizes = [16, 32], strides = [1, 1]} : vector<16x96xf32> to vector<16x32xf32>
    %126 = arith.addf %124, %125 : vector<16x32xf32>
    %127 = arith.negf %126 : vector<16x32xf32>
    %128 = math.exp %127 : vector<16x32xf32>
    %cst_42 = arith.constant 1.000000e+00 : f32
    %129 = vector.broadcast %cst_42 : f32 to vector<16x32xf32>
    %130 = arith.addf %129, %128 : vector<16x32xf32>
    %131 = arith.divf %129, %130 : vector<16x32xf32>
    %132 = vector.extract_strided_slice %114 {offsets = [0, 64], sizes = [16, 32], strides = [1, 1]} : vector<16x96xf32> to vector<16x32xf32>
    %133 = vector.extract_strided_slice %115 {offsets = [0, 64], sizes = [16, 32], strides = [1, 1]} : vector<16x96xf32> to vector<16x32xf32>
    %134 = arith.addf %133, %17 : vector<16x32xf32>
    %135 = arith.mulf %123, %134 : vector<16x32xf32>
    %136 = arith.addf %132, %135 : vector<16x32xf32>
    %137 = math.tanh %136 : vector<16x32xf32>
    %cst_43 = arith.constant 1.000000e+00 : f32
    %138 = vector.broadcast %cst_43 : f32 to vector<16x32xf32>
    %139 = arith.subf %138, %131 : vector<16x32xf32>
    %140 = arith.mulf %139, %137 : vector<16x32xf32>
    %141 = arith.mulf %131, %111 : vector<16x32xf32>
    %142 = arith.addf %140, %141 : vector<16x32xf32>
    %c4_i32 = arith.constant 4 : i32
    %143 = arith.index_cast %c4_i32 : i32 to index
    %c0_44 = arith.constant 0 : index
    %c0_45 = arith.constant 0 : index
    %144 = vector.load %arg16[%143, %c0_44, %c0_45] : memref<8x16x96xf32, #tpu.memory_space<vmem>>, vector<1x16x96xf32>
    %145 = vector.shape_cast %144 : vector<1x16x96xf32> to vector<16x96xf32>
    %cst_46 = arith.constant dense<0.000000e+00> : vector<16x96xf32>
    %146 = tpu.matmul %142, %14, %cst_46 {dimension_numbers = #tpu.dot_dimension_numbers<[1], [0], [0], [1], [0, 0, 1, 1], [], []>} : vector<16x32xf32>, vector<32x96xf32>, vector<16x96xf32> -> vector<16x96xf32>
    %147 = vector.extract_strided_slice %145 {offsets = [0, 0], sizes = [16, 32], strides = [1, 1]} : vector<16x96xf32> to vector<16x32xf32>
    %148 = vector.extract_strided_slice %146 {offsets = [0, 0], sizes = [16, 32], strides = [1, 1]} : vector<16x96xf32> to vector<16x32xf32>
    %149 = arith.addf %147, %148 : vector<16x32xf32>
    %150 = arith.negf %149 : vector<16x32xf32>
    %151 = math.exp %150 : vector<16x32xf32>
    %cst_47 = arith.constant 1.000000e+00 : f32
    %152 = vector.broadcast %cst_47 : f32 to vector<16x32xf32>
    %153 = arith.addf %152, %151 : vector<16x32xf32>
    %154 = arith.divf %152, %153 : vector<16x32xf32>
    %155 = vector.extract_strided_slice %145 {offsets = [0, 32], sizes = [16, 32], strides = [1, 1]} : vector<16x96xf32> to vector<16x32xf32>
    %156 = vector.extract_strided_slice %146 {offsets = [0, 32], sizes = [16, 32], strides = [1, 1]} : vector<16x96xf32> to vector<16x32xf32>
    %157 = arith.addf %155, %156 : vector<16x32xf32>
    %158 = arith.negf %157 : vector<16x32xf32>
    %159 = math.exp %158 : vector<16x32xf32>
    %cst_48 = arith.constant 1.000000e+00 : f32
    %160 = vector.broadcast %cst_48 : f32 to vector<16x32xf32>
    %161 = arith.addf %160, %159 : vector<16x32xf32>
    %162 = arith.divf %160, %161 : vector<16x32xf32>
    %163 = vector.extract_strided_slice %145 {offsets = [0, 64], sizes = [16, 32], strides = [1, 1]} : vector<16x96xf32> to vector<16x32xf32>
    %164 = vector.extract_strided_slice %146 {offsets = [0, 64], sizes = [16, 32], strides = [1, 1]} : vector<16x96xf32> to vector<16x32xf32>
    %165 = arith.addf %164, %17 : vector<16x32xf32>
    %166 = arith.mulf %154, %165 : vector<16x32xf32>
    %167 = arith.addf %163, %166 : vector<16x32xf32>
    %168 = math.tanh %167 : vector<16x32xf32>
    %cst_49 = arith.constant 1.000000e+00 : f32
    %169 = vector.broadcast %cst_49 : f32 to vector<16x32xf32>
    %170 = arith.subf %169, %162 : vector<16x32xf32>
    %171 = arith.mulf %170, %168 : vector<16x32xf32>
    %172 = arith.mulf %162, %142 : vector<16x32xf32>
    %173 = arith.addf %171, %172 : vector<16x32xf32>
    %c5_i32 = arith.constant 5 : i32
    %174 = arith.index_cast %c5_i32 : i32 to index
    %c0_50 = arith.constant 0 : index
    %c0_51 = arith.constant 0 : index
    %175 = vector.load %arg16[%174, %c0_50, %c0_51] : memref<8x16x96xf32, #tpu.memory_space<vmem>>, vector<1x16x96xf32>
    %176 = vector.shape_cast %175 : vector<1x16x96xf32> to vector<16x96xf32>
    %cst_52 = arith.constant dense<0.000000e+00> : vector<16x96xf32>
    %177 = tpu.matmul %173, %14, %cst_52 {dimension_numbers = #tpu.dot_dimension_numbers<[1], [0], [0], [1], [0, 0, 1, 1], [], []>} : vector<16x32xf32>, vector<32x96xf32>, vector<16x96xf32> -> vector<16x96xf32>
    %178 = vector.extract_strided_slice %176 {offsets = [0, 0], sizes = [16, 32], strides = [1, 1]} : vector<16x96xf32> to vector<16x32xf32>
    %179 = vector.extract_strided_slice %177 {offsets = [0, 0], sizes = [16, 32], strides = [1, 1]} : vector<16x96xf32> to vector<16x32xf32>
    %180 = arith.addf %178, %179 : vector<16x32xf32>
    %181 = arith.negf %180 : vector<16x32xf32>
    %182 = math.exp %181 : vector<16x32xf32>
    %cst_53 = arith.constant 1.000000e+00 : f32
    %183 = vector.broadcast %cst_53 : f32 to vector<16x32xf32>
    %184 = arith.addf %183, %182 : vector<16x32xf32>
    %185 = arith.divf %183, %184 : vector<16x32xf32>
    %186 = vector.extract_strided_slice %176 {offsets = [0, 32], sizes = [16, 32], strides = [1, 1]} : vector<16x96xf32> to vector<16x32xf32>
    %187 = vector.extract_strided_slice %177 {offsets = [0, 32], sizes = [16, 32], strides = [1, 1]} : vector<16x96xf32> to vector<16x32xf32>
    %188 = arith.addf %186, %187 : vector<16x32xf32>
    %189 = arith.negf %188 : vector<16x32xf32>
    %190 = math.exp %189 : vector<16x32xf32>
    %cst_54 = arith.constant 1.000000e+00 : f32
    %191 = vector.broadcast %cst_54 : f32 to vector<16x32xf32>
    %192 = arith.addf %191, %190 : vector<16x32xf32>
    %193 = arith.divf %191, %192 : vector<16x32xf32>
    %194 = vector.extract_strided_slice %176 {offsets = [0, 64], sizes = [16, 32], strides = [1, 1]} : vector<16x96xf32> to vector<16x32xf32>
    %195 = vector.extract_strided_slice %177 {offsets = [0, 64], sizes = [16, 32], strides = [1, 1]} : vector<16x96xf32> to vector<16x32xf32>
    %196 = arith.addf %195, %17 : vector<16x32xf32>
    %197 = arith.mulf %185, %196 : vector<16x32xf32>
    %198 = arith.addf %194, %197 : vector<16x32xf32>
    %199 = math.tanh %198 : vector<16x32xf32>
    %cst_55 = arith.constant 1.000000e+00 : f32
    %200 = vector.broadcast %cst_55 : f32 to vector<16x32xf32>
    %201 = arith.subf %200, %193 : vector<16x32xf32>
    %202 = arith.mulf %201, %199 : vector<16x32xf32>
    %203 = arith.mulf %193, %173 : vector<16x32xf32>
    %204 = arith.addf %202, %203 : vector<16x32xf32>
    %c6_i32 = arith.constant 6 : i32
    %205 = arith.index_cast %c6_i32 : i32 to index
    %c0_56 = arith.constant 0 : index
    %c0_57 = arith.constant 0 : index
    %206 = vector.load %arg16[%205, %c0_56, %c0_57] : memref<8x16x96xf32, #tpu.memory_space<vmem>>, vector<1x16x96xf32>
    %207 = vector.shape_cast %206 : vector<1x16x96xf32> to vector<16x96xf32>
    %cst_58 = arith.constant dense<0.000000e+00> : vector<16x96xf32>
    %208 = tpu.matmul %204, %14, %cst_58 {dimension_numbers = #tpu.dot_dimension_numbers<[1], [0], [0], [1], [0, 0, 1, 1], [], []>} : vector<16x32xf32>, vector<32x96xf32>, vector<16x96xf32> -> vector<16x96xf32>
    %209 = vector.extract_strided_slice %207 {offsets = [0, 0], sizes = [16, 32], strides = [1, 1]} : vector<16x96xf32> to vector<16x32xf32>
    %210 = vector.extract_strided_slice %208 {offsets = [0, 0], sizes = [16, 32], strides = [1, 1]} : vector<16x96xf32> to vector<16x32xf32>
    %211 = arith.addf %209, %210 : vector<16x32xf32>
    %212 = arith.negf %211 : vector<16x32xf32>
    %213 = math.exp %212 : vector<16x32xf32>
    %cst_59 = arith.constant 1.000000e+00 : f32
    %214 = vector.broadcast %cst_59 : f32 to vector<16x32xf32>
    %215 = arith.addf %214, %213 : vector<16x32xf32>
    %216 = arith.divf %214, %215 : vector<16x32xf32>
    %217 = vector.extract_strided_slice %207 {offsets = [0, 32], sizes = [16, 32], strides = [1, 1]} : vector<16x96xf32> to vector<16x32xf32>
    %218 = vector.extract_strided_slice %208 {offsets = [0, 32], sizes = [16, 32], strides = [1, 1]} : vector<16x96xf32> to vector<16x32xf32>
    %219 = arith.addf %217, %218 : vector<16x32xf32>
    %220 = arith.negf %219 : vector<16x32xf32>
    %221 = math.exp %220 : vector<16x32xf32>
    %cst_60 = arith.constant 1.000000e+00 : f32
    %222 = vector.broadcast %cst_60 : f32 to vector<16x32xf32>
    %223 = arith.addf %222, %221 : vector<16x32xf32>
    %224 = arith.divf %222, %223 : vector<16x32xf32>
    %225 = vector.extract_strided_slice %207 {offsets = [0, 64], sizes = [16, 32], strides = [1, 1]} : vector<16x96xf32> to vector<16x32xf32>
    %226 = vector.extract_strided_slice %208 {offsets = [0, 64], sizes = [16, 32], strides = [1, 1]} : vector<16x96xf32> to vector<16x32xf32>
    %227 = arith.addf %226, %17 : vector<16x32xf32>
    %228 = arith.mulf %216, %227 : vector<16x32xf32>
    %229 = arith.addf %225, %228 : vector<16x32xf32>
    %230 = math.tanh %229 : vector<16x32xf32>
    %cst_61 = arith.constant 1.000000e+00 : f32
    %231 = vector.broadcast %cst_61 : f32 to vector<16x32xf32>
    %232 = arith.subf %231, %224 : vector<16x32xf32>
    %233 = arith.mulf %232, %230 : vector<16x32xf32>
    %234 = arith.mulf %224, %204 : vector<16x32xf32>
    %235 = arith.addf %233, %234 : vector<16x32xf32>
    %c7_i32 = arith.constant 7 : i32
    %236 = arith.index_cast %c7_i32 : i32 to index
    %c0_62 = arith.constant 0 : index
    %c0_63 = arith.constant 0 : index
    %237 = vector.load %arg16[%236, %c0_62, %c0_63] : memref<8x16x96xf32, #tpu.memory_space<vmem>>, vector<1x16x96xf32>
    %238 = vector.shape_cast %237 : vector<1x16x96xf32> to vector<16x96xf32>
    %cst_64 = arith.constant dense<0.000000e+00> : vector<16x96xf32>
    %239 = tpu.matmul %235, %14, %cst_64 {dimension_numbers = #tpu.dot_dimension_numbers<[1], [0], [0], [1], [0, 0, 1, 1], [], []>} : vector<16x32xf32>, vector<32x96xf32>, vector<16x96xf32> -> vector<16x96xf32>
    %240 = vector.extract_strided_slice %238 {offsets = [0, 0], sizes = [16, 32], strides = [1, 1]} : vector<16x96xf32> to vector<16x32xf32>
    %241 = vector.extract_strided_slice %239 {offsets = [0, 0], sizes = [16, 32], strides = [1, 1]} : vector<16x96xf32> to vector<16x32xf32>
    %242 = arith.addf %240, %241 : vector<16x32xf32>
    %243 = arith.negf %242 : vector<16x32xf32>
    %244 = math.exp %243 : vector<16x32xf32>
    %cst_65 = arith.constant 1.000000e+00 : f32
    %245 = vector.broadcast %cst_65 : f32 to vector<16x32xf32>
    %246 = arith.addf %245, %244 : vector<16x32xf32>
    %247 = arith.divf %245, %246 : vector<16x32xf32>
    %248 = vector.extract_strided_slice %238 {offsets = [0, 32], sizes = [16, 32], strides = [1, 1]} : vector<16x96xf32> to vector<16x32xf32>
    %249 = vector.extract_strided_slice %239 {offsets = [0, 32], sizes = [16, 32], strides = [1, 1]} : vector<16x96xf32> to vector<16x32xf32>
    %250 = arith.addf %248, %249 : vector<16x32xf32>
    %251 = arith.negf %250 : vector<16x32xf32>
    %252 = math.exp %251 : vector<16x32xf32>
    %cst_66 = arith.constant 1.000000e+00 : f32
    %253 = vector.broadcast %cst_66 : f32 to vector<16x32xf32>
    %254 = arith.addf %253, %252 : vector<16x32xf32>
    %255 = arith.divf %253, %254 : vector<16x32xf32>
    %256 = vector.extract_strided_slice %238 {offsets = [0, 64], sizes = [16, 32], strides = [1, 1]} : vector<16x96xf32> to vector<16x32xf32>
    %257 = vector.extract_strided_slice %239 {offsets = [0, 64], sizes = [16, 32], strides = [1, 1]} : vector<16x96xf32> to vector<16x32xf32>
    %258 = arith.addf %257, %17 : vector<16x32xf32>
    %259 = arith.mulf %247, %258 : vector<16x32xf32>
    %260 = arith.addf %256, %259 : vector<16x32xf32>
    %261 = math.tanh %260 : vector<16x32xf32>
    %cst_67 = arith.constant 1.000000e+00 : f32
    %262 = vector.broadcast %cst_67 : f32 to vector<16x32xf32>
    %263 = arith.subf %262, %255 : vector<16x32xf32>
    %264 = arith.mulf %263, %261 : vector<16x32xf32>
    %265 = arith.mulf %255, %235 : vector<16x32xf32>
    %266 = arith.addf %264, %265 : vector<16x32xf32>
    %c8_i32 = arith.constant 8 : i32
    %c0_68 = arith.constant 0 : index
    %c0_69 = arith.constant 0 : index
    %267 = vector.load %arg7[%c0_68, %c0_69] : memref<32x32xf32, #tpu.memory_space<vmem>>, vector<32x32xf32>
    %cst_70 = arith.constant dense<0.000000e+00> : vector<16x32xf32>
    %268 = tpu.matmul %266, %267, %cst_70 {dimension_numbers = #tpu.dot_dimension_numbers<[1], [0], [0], [1], [0, 0, 1, 1], [], []>} : vector<16x32xf32>, vector<32x32xf32>, vector<16x32xf32> -> vector<16x32xf32>
    %c0_71 = arith.constant 0 : index
    %c0_72 = arith.constant 0 : index
    %269 = vector.load %arg8[%c0_71, %c0_72] : memref<1x32xf32, #tpu.memory_space<vmem>>, vector<1x32xf32>
    %270 = vector.broadcast %269 : vector<1x32xf32> to vector<16x32xf32>
    %271 = arith.addf %268, %270 : vector<16x32xf32>
    %cst_73 = arith.constant 0.000000e+00 : f32
    %272 = vector.broadcast %cst_73 : f32 to vector<16x32xf32>
    %273 = arith.maximumf %271, %272 : vector<16x32xf32>
    %c0_74 = arith.constant 0 : index
    %c0_75 = arith.constant 0 : index
    %274 = vector.load %arg2[%c0_74, %c0_75] : memref<16x24xf32, #tpu.memory_space<vmem>>, vector<16x24xf32>
    %c0_76 = arith.constant 0 : index
    %c0_77 = arith.constant 0 : index
    %275 = vector.load %arg9[%c0_76, %c0_77] : memref<24x32xf32, #tpu.memory_space<vmem>>, vector<24x32xf32>
    %cst_78 = arith.constant dense<0.000000e+00> : vector<16x32xf32>
    %276 = tpu.matmul %274, %275, %cst_78 {dimension_numbers = #tpu.dot_dimension_numbers<[1], [0], [0], [1], [0, 0, 1, 1], [], []>} : vector<16x24xf32>, vector<24x32xf32>, vector<16x32xf32> -> vector<16x32xf32>
    %c0_79 = arith.constant 0 : index
    %c0_80 = arith.constant 0 : index
    %277 = vector.load %arg10[%c0_79, %c0_80] : memref<1x32xf32, #tpu.memory_space<vmem>>, vector<1x32xf32>
    %278 = vector.broadcast %277 : vector<1x32xf32> to vector<16x32xf32>
    %279 = arith.addf %276, %278 : vector<16x32xf32>
    %cst_81 = arith.constant 0.000000e+00 : f32
    %280 = vector.broadcast %cst_81 : f32 to vector<16x32xf32>
    %281 = arith.maximumf %279, %280 : vector<16x32xf32>
    %282 = arith.mulf %273, %281 : vector<16x32xf32>
    %c0_82 = arith.constant 0 : index
    %c0_83 = arith.constant 0 : index
    %283 = vector.load %arg11[%c0_82, %c0_83] : memref<32x64xf32, #tpu.memory_space<vmem>>, vector<32x64xf32>
    %cst_84 = arith.constant dense<0.000000e+00> : vector<16x64xf32>
    %284 = tpu.matmul %282, %283, %cst_84 {dimension_numbers = #tpu.dot_dimension_numbers<[1], [0], [0], [1], [0, 0, 1, 1], [], []>} : vector<16x32xf32>, vector<32x64xf32>, vector<16x64xf32> -> vector<16x64xf32>
    %c0_85 = arith.constant 0 : index
    %c0_86 = arith.constant 0 : index
    %285 = vector.load %arg12[%c0_85, %c0_86] : memref<1x64xf32, #tpu.memory_space<vmem>>, vector<1x64xf32>
    %286 = vector.broadcast %285 : vector<1x64xf32> to vector<16x64xf32>
    %287 = arith.addf %284, %286 : vector<16x64xf32>
    %cst_87 = arith.constant 0.000000e+00 : f32
    %288 = vector.broadcast %cst_87 : f32 to vector<16x64xf32>
    %289 = arith.maximumf %287, %288 : vector<16x64xf32>
    %c0_i32_88 = arith.constant 0 : i32
    %c0_i32_89 = arith.constant 0 : i32
    %c0_i32_90 = arith.constant 0 : i32
    %c0_i32_91 = arith.constant 0 : i32
    %290 = tpu.memref_slice %arg14[%c0_i32_90, %c0_i32_91] : memref<64x128xf32, #tpu.memory_space<any>> -> memref<64x128xf32, #tpu.memory_space<any>>
    %c0_i32_92 = arith.constant 0 : i32
    %c0_i32_93 = arith.constant 0 : i32
    %291 = tpu.memref_slice %arg17[%c0_i32_88, %c0_i32_92, %c0_i32_93] : memref<2x64x128xf32, #tpu.memory_space<vmem>> -> memref<1x64x128xf32, #tpu.memory_space<vmem>>
    %292 = tpu.memref_squeeze %291 : memref<1x64x128xf32, #tpu.memory_space<vmem>> -> memref<64x128xf32, #tpu.memory_space<vmem>>
    %293 = tpu.memref_slice %arg18[%c0_i32_89] : memref<2x!tpu.dma_semaphore, #tpu.memory_space<semaphore_mem>> -> memref<1x!tpu.dma_semaphore, #tpu.memory_space<semaphore_mem>>
    %294 = tpu.memref_squeeze %293 : memref<1x!tpu.dma_semaphore, #tpu.memory_space<semaphore_mem>> -> memref<!tpu.dma_semaphore, #tpu.memory_space<semaphore_mem>>
    tpu.wait_dma2 semaphore(%294 : memref<!tpu.dma_semaphore, #tpu.memory_space<semaphore_mem>>) src(%290 : memref<64x128xf32, #tpu.memory_space<any>>) dst(%292 : memref<64x128xf32, #tpu.memory_space<vmem>>)
    %c0_94 = arith.constant 0 : index
    %c0_95 = arith.constant 0 : index
    %c0_96 = arith.constant 0 : index
    %295 = vector.load %arg17[%c0_94, %c0_95, %c0_96] : memref<2x64x128xf32, #tpu.memory_space<vmem>>, vector<1x64x128xf32>
    %296 = vector.shape_cast %295 : vector<1x64x128xf32> to vector<64x128xf32>
    %cst_97 = arith.constant dense<0.000000e+00> : vector<16x128xf32>
    %297 = tpu.matmul %289, %296, %cst_97 {dimension_numbers = #tpu.dot_dimension_numbers<[1], [0], [0], [1], [0, 0, 1, 1], [], []>} : vector<16x64xf32>, vector<64x128xf32>, vector<16x128xf32> -> vector<16x128xf32>
    %c0_98 = arith.constant 0 : index
    %c0_99 = arith.constant 0 : index
    %298 = vector.load %arg13[%c0_98, %c0_99] : memref<1x128xf32, #tpu.memory_space<vmem>>, vector<1x128xf32>
    %299 = vector.broadcast %298 : vector<1x128xf32> to vector<16x128xf32>
    %300 = arith.addf %297, %299 : vector<16x128xf32>
    %c0_100 = arith.constant 0 : index
    %c0_101 = arith.constant 0 : index
    %301 = vector.load %arg15[%c0_100, %c0_101] : memref<16x128xf32, #tpu.memory_space<vmem>>, vector<16x128xf32>
    tpu.vector_store %arg15[%c0_100, %c0_101], %300 {strides = array<i32>} : memref<16x128xf32, #tpu.memory_space<vmem>>, vector<16x128xf32>,
    return
  }
  func.func @transform_0(%arg0: i32) -> (i32, i32, i32) {
    %c0_i32 = arith.constant 0 : i32
    %c0_i32_0 = arith.constant 0 : i32
    %c0_i32_1 = arith.constant 0 : i32
    return %c0_i32, %arg0, %c0_i32_0 : i32, i32, i32
  }
  func.func @transform_1(%arg0: i32) -> (i32, i32) {
    %c0_i32 = arith.constant 0 : i32
    %c0_i32_0 = arith.constant 0 : i32
    return %arg0, %c0_i32 : i32, i32
  }
  func.func @transform_2(%arg0: i32) -> (i32, i32) {
    %c0_i32 = arith.constant 0 : i32
    %c0_i32_0 = arith.constant 0 : i32
    %c0_i32_1 = arith.constant 0 : i32
    return %c0_i32, %c0_i32_0 : i32, i32
  }
  func.func @transform_3(%arg0: i32) -> (i32, i32) {
    %c0_i32 = arith.constant 0 : i32
    %c0_i32_0 = arith.constant 0 : i32
    %c0_i32_1 = arith.constant 0 : i32
    return %c0_i32, %c0_i32_0 : i32, i32
  }
  func.func @transform_4(%arg0: i32) -> (i32, i32) {
    %c0_i32 = arith.constant 0 : i32
    %c0_i32_0 = arith.constant 0 : i32
    %c0_i32_1 = arith.constant 0 : i32
    return %c0_i32, %c0_i32_0 : i32, i32
  }
  func.func @transform_5(%arg0: i32) -> (i32, i32) {
    %c0_i32 = arith.constant 0 : i32
    %c0_i32_0 = arith.constant 0 : i32
    %c0_i32_1 = arith.constant 0 : i32
    return %c0_i32, %c0_i32_0 : i32, i32
  }
  func.func @transform_6(%arg0: i32) -> (i32, i32) {
    %c0_i32 = arith.constant 0 : i32
    %c0_i32_0 = arith.constant 0 : i32
    %c0_i32_1 = arith.constant 0 : i32
    return %c0_i32, %c0_i32_0 : i32, i32
  }
  func.func @transform_7(%arg0: i32) -> (i32, i32) {
    %c0_i32 = arith.constant 0 : i32
    %c0_i32_0 = arith.constant 0 : i32
    %c0_i32_1 = arith.constant 0 : i32
    return %c0_i32, %c0_i32_0 : i32, i32
  }
  func.func @transform_8(%arg0: i32) -> (i32, i32) {
    %c0_i32 = arith.constant 0 : i32
    %c0_i32_0 = arith.constant 0 : i32
    %c0_i32_1 = arith.constant 0 : i32
    return %c0_i32, %c0_i32_0 : i32, i32
  }
  func.func @transform_9(%arg0: i32) -> (i32, i32) {
    %c0_i32 = arith.constant 0 : i32
    %c0_i32_0 = arith.constant 0 : i32
    %c0_i32_1 = arith.constant 0 : i32
    return %c0_i32, %c0_i32_0 : i32, i32
  }
  func.func @transform_10(%arg0: i32) -> (i32, i32) {
    %c0_i32 = arith.constant 0 : i32
    %c0_i32_0 = arith.constant 0 : i32
    %c0_i32_1 = arith.constant 0 : i32
    return %c0_i32, %c0_i32_0 : i32, i32
  }
  func.func @transform_11(%arg0: i32) -> (i32, i32) {
    %c0_i32 = arith.constant 0 : i32
    %c0_i32_0 = arith.constant 0 : i32
    %c0_i32_1 = arith.constant 0 : i32
    return %c0_i32, %c0_i32_0 : i32, i32
  }
  func.func @transform_12(%arg0: i32) -> (i32, i32) {
    %c0_i32 = arith.constant 0 : i32
    %c0_i32_0 = arith.constant 0 : i32
    %c0_i32_1 = arith.constant 0 : i32
    return %c0_i32, %c0_i32_0 : i32, i32
  }
  func.func @transform_14(%arg0: i32) -> (i32, i32) {
    %c0_i32 = arith.constant 0 : i32
    %c0_i32_0 = arith.constant 0 : i32
    return %arg0, %c0_i32 : i32, i32
  }
}

</mosaic_0001>

<llo_original>
// kernel: tpu_custom_call.1
$region0: #{tpu_custom_call.1}
  #allocation0 [shape = 'u32[]', space=smem, size = 0x4, offset = 0x4, fixed_abs, tag = 'smem constant byte address 0x4 - core index']
  #allocation1 [shape = 'u32[72,128]{1,0:T(1,128)}', space=vmem, size = 0x9000, scoped, tag = 'internal scratch']
  #allocation2 [shape = 'f32[8,16,96]{2,1,0:T(8,128)}', space=vmem, size = 0x10000, scoped, tag = 'scratch operand']
  #allocation3 [shape = 'f32[2,64,128]{2,1,0:T(8,128)}', space=vmem, size = 0x10000, scoped, tag = 'scratch operand']
  #allocation4 [shape = 's32[2]{0}', space=sflag, size = 0x8, scoped, tag = 'scratch operand']
  #allocation14 [shape = 's32[]', space=sflag, size = 0x4, offset = 0, fixed_abs, tag = 'sflag constant byte address 0x0 - dummy sync flag']
  %s0 = inlined_call_operand.vmem [shape: f32[8,16,128], index: 0, kind: input, shape index: {}]
  %s1 = inlined_call_operand.hbm [shape: f32[16,24], index: 1, kind: input, shape index: {}]
  %s2 = inlined_call_operand.vmem [shape: f32[128,96], index: 2, kind: input, shape index: {}]
  %s3 = inlined_call_operand.vmem [shape: f32[32,96], index: 3, kind: input, shape index: {}]
  %s4 = inlined_call_operand.vmem [shape: f32[1,96], index: 4, kind: input, shape index: {}]
  %s5 = inlined_call_operand.vmem [shape: f32[1,32], index: 5, kind: input, shape index: {}]
  %s6 = inlined_call_operand.hbm [shape: f32[32,32], index: 6, kind: input, shape index: {}]
  %s7 = inlined_call_operand.vmem [shape: f32[1,32], index: 7, kind: input, shape index: {}]
  %s8 = inlined_call_operand.hbm [shape: f32[24,32], index: 8, kind: input, shape index: {}]
  %s9 = inlined_call_operand.vmem [shape: f32[1,32], index: 9, kind: input, shape index: {}]
  %s10 = inlined_call_operand.hbm [shape: f32[32,64], index: 10, kind: input, shape index: {}]
  %s11 = inlined_call_operand.vmem [shape: f32[1,64], index: 11, kind: input, shape index: {}]
  %s12 = inlined_call_operand.vmem [shape: f32[1,128], index: 12, kind: input, shape index: {}]
  %s13 = inlined_call_operand.vmem [shape: f32[64,128], index: 13, kind: input, shape index: {}]
  %s14 = inlined_call_operand.hbm [shape: f32[16,128], index: 14, kind: output, shape index: {}]
  %s15 = sld [smem:[#allocation0]]
  $region97: #{tpu_custom_call.1} parent=0
    _
  %s17 = ssub.s32 1, %s15
  %s18 = scalar_select 0, %s17, %s15
  $region1: #{tpu_custom_call.1} parent=0
    #allocation5 [shape = 'u8[8192]{0}', space=vmem, size = 0x2000, scoped, tag = 'input window, operand 1, single buffered']
    #allocation6 [shape = 's32[1]{0}', space=sflag, size = 0x4, scoped, tag = 'scoped memory for tpu_custom_call.1']
    #allocation7 [shape = 's32[1]{0}', space=sflag, size = 0x4, scoped, tag = 'scoped memory for tpu_custom_call.1']
    #allocation8 [shape = 'u8[16384]{0}', space=vmem, size = 0x4000, scoped, tag = 'input window, operand 6, single buffered']
    #allocation9 [shape = 's32[1]{0}', space=sflag, size = 0x4, scoped, tag = 'scoped memory for tpu_custom_call.1']
    #allocation10 [shape = 'u8[12288]{0}', space=vmem, size = 0x3000, scoped, tag = 'input window, operand 8, single buffered']
    #allocation11 [shape = 'u8[16384]{0}', space=vmem, size = 0x4000, scoped, tag = 'input window, operand 10, single buffered']
    #allocation12 [shape = 's32[1]{0}', space=sflag, size = 0x4, scoped, tag = 'scoped memory for tpu_custom_call.1']
    #allocation13 [shape = 'u8[8192]{0}', space=vmem, size = 0x2000, scoped, tag = 'output window, operand 0, single buffered']
    %19 = vsyncpa [#allocation6], 0
    %20 = vsyncpa [#allocation9], 0
    %21 = vsyncpa [#allocation12], 0
    %22 = vsyncpa [#allocation7], 0
    // Predicated region
    $region2: #{tpu_custom_call.1} parent=1 // pred_check
      _
    $region3: #{tpu_custom_call.1} parent=1 // pred_check_branch
      %24 = sbr.rel (0) target = $region5
    $region4: #{tpu_custom_call.1} parent=1 // pred_region
      _
    $region5: #{tpu_custom_call.1} parent=1 // pred_fallthru
      _
    // Predicated region
    $region6: #{tpu_custom_call.1} parent=1 // pred_check
      _
    $region7: #{tpu_custom_call.1} parent=1 // pred_check_branch
      %26 = sbr.rel (0) target = $region9
    $region8: #{tpu_custom_call.1} parent=1 // pred_region
      %28 = vsyncadd [#allocation6], 0
      %s29 = sshll.u32 %s1, 4
      %s30 = int_to_ptr.hbm [resolvable:$true] %s29
      %s31 = sshll.u32 [#allocation5], 4
      %s32 = int_to_ptr.vmem [resolvable:$true] %s31
      %37 = dma.hbm_to_vmem [thread:$0]  %s30, 256, %s32, [#allocation6], 128, 128, 8
    $region9: #{tpu_custom_call.1} parent=1 // pred_fallthru
      _
    // Predicated region
    $region10: #{tpu_custom_call.1} parent=1 // pred_check
      _
    $region11: #{tpu_custom_call.1} parent=1 // pred_check_branch
      %39 = sbr.rel (0) target = $region13
    $region12: #{tpu_custom_call.1} parent=1 // pred_region
      _
    $region13: #{tpu_custom_call.1} parent=1 // pred_fallthru
      _
    // Predicated region
    $region14: #{tpu_custom_call.1} parent=1 // pred_check
      _
    $region15: #{tpu_custom_call.1} parent=1 // pred_check_branch
      %41 = sbr.rel (0) target = $region17
    $region16: #{tpu_custom_call.1} parent=1 // pred_region
      _
    $region17: #{tpu_custom_call.1} parent=1 // pred_fallthru
      _
    // Predicated region
    $region18: #{tpu_custom_call.1} parent=1 // pred_check
      _
    $region19: #{tpu_custom_call.1} parent=1 // pred_check_branch
      %43 = sbr.rel (0) target = $region21
    $region20: #{tpu_custom_call.1} parent=1 // pred_region
      _
    $region21: #{tpu_custom_call.1} parent=1 // pred_fallthru
      _
    // Predicated region
    $region22: #{tpu_custom_call.1} parent=1 // pred_check
      _
    $region23: #{tpu_custom_call.1} parent=1 // pred_check_branch
      %45 = sbr.rel (0) target = $region25
    $region24: #{tpu_custom_call.1} parent=1 // pred_region
      _
    $region25: #{tpu_custom_call.1} parent=1 // pred_fallthru
      _
    // Predicated region
    $region26: #{tpu_custom_call.1} parent=1 // pred_check
      _
    $region27: #{tpu_custom_call.1} parent=1 // pred_check_branch
      %47 = sbr.rel (0) target = $region29
    $region28: #{tpu_custom_call.1} parent=1 // pred_region
      %49 = vsyncadd [#allocation9], 0
      %s50 = sshll.u32 %s6, 4
      %s51 = int_to_ptr.hbm [resolvable:$true] %s50
      %s52 = sshll.u32 [#allocation8], 4
      %s53 = int_to_ptr.vmem [resolvable:$true] %s52
      %58 = dma.hbm_to_vmem [thread:$0]  %s51, 512, %s53, [#allocation9], 128, 128, 8
    $region29: #{tpu_custom_call.1} parent=1 // pred_fallthru
      _
    // Predicated region
    $region30: #{tpu_custom_call.1} parent=1 // pred_check
      _
    $region31: #{tpu_custom_call.1} parent=1 // pred_check_branch
      %60 = sbr.rel (0) target = $region33
    $region32: #{tpu_custom_call.1} parent=1 // pred_region
      _
    $region33: #{tpu_custom_call.1} parent=1 // pred_fallthru
      _
    // Predicated region
    $region34: #{tpu_custom_call.1} parent=1 // pred_check
      _
    $region35: #{tpu_custom_call.1} parent=1 // pred_check_branch
      %62 = sbr.rel (0) target = $region37
    $region36: #{tpu_custom_call.1} parent=1 // pred_region
      %64 = vsyncadd [#allocation9], 0
      %s65 = sshll.u32 %s8, 4
      %s66 = int_to_ptr.hbm [resolvable:$true] %s65
      %s67 = sshll.u32 [#allocation10], 4
      %s68 = int_to_ptr.vmem [resolvable:$true] %s67
      %73 = dma.hbm_to_vmem [thread:$0]  %s66, 384, %s68, [#allocation9], 128, 128, 8
    $region37: #{tpu_custom_call.1} parent=1 // pred_fallthru
      _
    // Predicated region
    $region38: #{tpu_custom_call.1} parent=1 // pred_check
      _
    $region39: #{tpu_custom_call.1} parent=1 // pred_check_branch
      %75 = sbr.rel (0) target = $region41
    $region40: #{tpu_custom_call.1} parent=1 // pred_region
      _
    $region41: #{tpu_custom_call.1} parent=1 // pred_fallthru
      _
    // Predicated region
    $region42: #{tpu_custom_call.1} parent=1 // pred_check
      _
    $region43: #{tpu_custom_call.1} parent=1 // pred_check_branch
      %77 = sbr.rel (0) target = $region45
    $region44: #{tpu_custom_call.1} parent=1 // pred_region
      %79 = vsyncadd [#allocation12], 0
      %s80 = sshll.u32 %s10, 4
      %s81 = int_to_ptr.hbm [resolvable:$true] %s80
      %s82 = sshll.u32 [#allocation11], 4
      %s83 = int_to_ptr.vmem [resolvable:$true] %s82
      %88 = dma.hbm_to_vmem [thread:$0]  %s81, 512, %s83, [#allocation12], 128, 128, 8
    $region45: #{tpu_custom_call.1} parent=1 // pred_fallthru
      _
    // Predicated region
    $region46: #{tpu_custom_call.1} parent=1 // pred_check
      _
    $region47: #{tpu_custom_call.1} parent=1 // pred_check_branch
      %90 = sbr.rel (0) target = $region49
    $region48: #{tpu_custom_call.1} parent=1 // pred_region
      _
    $region49: #{tpu_custom_call.1} parent=1 // pred_fallthru
      _
    // Predicated region
    $region50: #{tpu_custom_call.1} parent=1 // pred_check
      _
    $region51: #{tpu_custom_call.1} parent=1 // pred_check_branch
      %92 = sbr.rel (0) target = $region53
    $region52: #{tpu_custom_call.1} parent=1 // pred_region
      _
    $region53: #{tpu_custom_call.1} parent=1 // pred_fallthru
      _
    // Predicated region
    $region54: #{tpu_custom_call.1} parent=1 // pred_check
      _
    $region55: #{tpu_custom_call.1} parent=1 // pred_check_branch
      %94 = sbr.rel (0) target = $region57
    $region56: #{tpu_custom_call.1} parent=1 // pred_region
      %96 = dma.done [#allocation6], 256
    $region57: #{tpu_custom_call.1} parent=1 // pred_fallthru
      _
    // Predicated region
    $region58: #{tpu_custom_call.1} parent=1 // pred_check
      _
    $region59: #{tpu_custom_call.1} parent=1 // pred_check_branch
      %98 = sbr.rel (0) target = $region61
    $region60: #{tpu_custom_call.1} parent=1 // pred_region
      %100 = dma.done [#allocation9], 512
    $region61: #{tpu_custom_call.1} parent=1 // pred_fallthru
      _
    // Predicated region
    $region62: #{tpu_custom_call.1} parent=1 // pred_check
      _
    $region63: #{tpu_custom_call.1} parent=1 // pred_check_branch
      %102 = sbr.rel (0) target = $region65
    $region64: #{tpu_custom_call.1} parent=1 // pred_region
      %104 = dma.done [#allocation9], 384
    $region65: #{tpu_custom_call.1} parent=1 // pred_fallthru
      _
    // Predicated region
    $region66: #{tpu_custom_call.1} parent=1 // pred_check
      _
    $region67: #{tpu_custom_call.1} parent=1 // pred_check_branch
      %106 = sbr.rel (0) target = $region69
    $region68: #{tpu_custom_call.1} parent=1 // pred_region
      %108 = dma.done [#allocation12], 512
    $region69: #{tpu_custom_call.1} parent=1 // pred_fallthru
      _
    // Predicated region
    $region70: #{tpu_custom_call.1} parent=1 // pred_check
      _
    $region71: #{tpu_custom_call.1} parent=1 // pred_check_branch
      %110 = sbr.rel (0) target = $region73
    $region72: #{tpu_custom_call.1} parent=1 // pred_region
      loop: start=0, step=1, limit=1
      $region74: #{tpu_custom_call.1} parent=72 // loop_pre_header
        _
      $region75: #{tpu_custom_call.1} parent=72 // loop_header
        %s112 = sphi 0, %s116
        %p113 = scmp.ge.s32.totalorder %s112, 1
        %s117 = sphi %s13, %s13
        %s118 = sphi [#allocation3], [#allocation3]
      $region76: #{tpu_custom_call.1} parent=72 // loop_header_branch
        %115 = sbr.rel (%p113) target = $region80
      $region77: #{tpu_custom_call.1} parent=72 // loop_body
        %v119 = vld [vmem:[%s117] sm:$0xff]
        %120 = vst [vmem:[%s118] sm:$0xff] %v119
        %v121 = vld [vmem:[%s117 + $0x8] sm:$0xff]
        %122 = vst [vmem:[%s118 + $0x8] sm:$0xff] %v121
        %v123 = vld [vmem:[%s117 + $0x10] sm:$0xff]
        %124 = vst [vmem:[%s118 + $0x10] sm:$0xff] %v123
        %v125 = vld [vmem:[%s117 + $0x18] sm:$0xff]
        %126 = vst [vmem:[%s118 + $0x18] sm:$0xff] %v125
        %v127 = vld [vmem:[%s117 + $0x20] sm:$0xff]
        %128 = vst [vmem:[%s118 + $0x20] sm:$0xff] %v127
        %v129 = vld [vmem:[%s117 + $0x28] sm:$0xff]
        %130 = vst [vmem:[%s118 + $0x28] sm:$0xff] %v129
        %v131 = vld [vmem:[%s117 + $0x30] sm:$0xff]
        %132 = vst [vmem:[%s118 + $0x30] sm:$0xff] %v131
        %v133 = vld [vmem:[%s117 + $0x38] sm:$0xff]
        %134 = vst [vmem:[%s118 + $0x38] sm:$0xff] %v133
      $region78: #{tpu_custom_call.1} parent=72 // loop_footer
        %s116 = sadd.s32 1, %s112
      $region79: #{tpu_custom_call.1} parent=72 // loop_footer_branch
        %111 = sbr.rel target = $region75
      $region80: #{tpu_custom_call.1} parent=72 // loop_exit
        _
    $region73: #{tpu_custom_call.1} parent=1 // pred_fallthru
      _
    // Predicated region
    $region81: #{tpu_custom_call.1} parent=1 // pred_check
      _
    $region82: #{tpu_custom_call.1} parent=1 // pred_check_branch
      %136 = sbr.rel target = $region84
    $region83: #{tpu_custom_call.1} parent=1 // pred_region
      _
    $region84: #{tpu_custom_call.1} parent=1 // pred_fallthru
      _
    // Predicated region
    $region85: #{tpu_custom_call.1} parent=1 // pred_check
      _
    $region86: #{tpu_custom_call.1} parent=1 // pred_check_branch
      %139 = sbr.rel (0) target = $region88
    $region87: #{tpu_custom_call.1} parent=1 // pred_region
      %140 = vsyncadd [#allocation4], 1024
    $region88: #{tpu_custom_call.1} parent=1 // pred_fallthru
      _
    %v141 = vld [vmem:[%s0] sm:$0xff]
    %v142 = vld [vmem:[%s0 + $0x8] sm:$0xff]
    %v143 = vld [vmem:[%s0 + $0x10] sm:$0xff]
    %v144 = vld [vmem:[%s0 + $0x18] sm:$0xff]
    %v145 = vld [vmem:[%s0 + $0x20] sm:$0xff]
    %v146 = vld [vmem:[%s0 + $0x28] sm:$0xff]
    %v147 = vld [vmem:[%s0 + $0x30] sm:$0xff]
    %v148 = vld [vmem:[%s0 + $0x38] sm:$0xff]
    %v149 = vld [vmem:[%s0 + $0x40] sm:$0xff]
    %v150 = vld [vmem:[%s0 + $0x48] sm:$0xff]
    %v151 = vld [vmem:[%s0 + $0x50] sm:$0xff]
    %v152 = vld [vmem:[%s0 + $0x58] sm:$0xff]
    %v153 = vld [vmem:[%s0 + $0x60] sm:$0xff]
    %v154 = vld [vmem:[%s0 + $0x68] sm:$0xff]
    %v155 = vld [vmem:[%s0 + $0x70] sm:$0xff]
    %v156 = vld [vmem:[%s0 + $0x78] sm:$0xff]
    %v157 = vld [vmem:[%s2] sm:$0xff]
    %v158 = vld [vmem:[%s2 + $0x8] sm:$0xff]
    %v159 = vld [vmem:[%s2 + $0x10] sm:$0xff]
    %v160 = vld [vmem:[%s2 + $0x18] sm:$0xff]
    %v161 = vld [vmem:[%s2 + $0x20] sm:$0xff]
    %v162 = vld [vmem:[%s2 + $0x28] sm:$0xff]
    %v163 = vld [vmem:[%s2 + $0x30] sm:$0xff]
    %v164 = vld [vmem:[%s2 + $0x38] sm:$0xff]
    %v165 = vld [vmem:[%s2 + $0x40] sm:$0xff]
    %v166 = vld [vmem:[%s2 + $0x48] sm:$0xff]
    %v167 = vld [vmem:[%s2 + $0x50] sm:$0xff]
    %v168 = vld [vmem:[%s2 + $0x58] sm:$0xff]
    %v169 = vld [vmem:[%s2 + $0x60] sm:$0xff]
    %v170 = vld [vmem:[%s2 + $0x68] sm:$0xff]
    %v171 = vld [vmem:[%s2 + $0x70] sm:$0xff]
    %v172 = vld [vmem:[%s2 + $0x78] sm:$0xff]
    %v173 = vld [vmem:[%s4] sm:$0x1]
    %v175 = vperm.slane %v173, 0
    %177 = vmatpush.msra.mxu0 %v172
    %178 = vmatpush.msra.mxu0 %v171
    %179 = vmatpush.msra.mxu0 %v170
    %180 = vmatpush.msra.mxu0 %v169
    %181 = vmatpush.msra.mxu0 %v168
    %182 = vmatpush.msra.mxu0 %v167
    %183 = vmatpush.msra.mxu0 %v166
    %184 = vmatpush.msra.mxu0 %v165
    %185 = vmatpush.msra.mxu0 %v164
    %186 = vmatpush.msra.mxu0 %v163
    %187 = vmatpush.msra.mxu0 %v162
    %188 = vmatpush.msra.mxu0 %v161
    %189 = vmatpush.msra.mxu0 %v160
    %190 = vmatpush.msra.mxu0 %v159
    %191 = vmatpush.msra.mxu0 %v158
    %192 = vmatpush.msra.mxu0 %v157
    %193 = vmatmul.f32.gmra.mxu0 %v141
    %v194 = vpop.f32.mrf.mxu0
    %v195 = vadd.f32 %v175, %v194
    %196 = vmatmul.f32.gmra.mxu0 %v142
    %v197 = vpop.f32.mrf.mxu0
    %v198 = vadd.f32 %v175, %v197
    %199 = vmatmul.f32.gmra.mxu0 %v143
    %v200 = vpop.f32.mrf.mxu0
    %v201 = vadd.f32 %v175, %v200
    %202 = vmatmul.f32.gmra.mxu0 %v144
    %v203 = vpop.f32.mrf.mxu0
    %v204 = vadd.f32 %v175, %v203
    %205 = vmatmul.f32.gmra.mxu0 %v145
    %v206 = vpop.f32.mrf.mxu0
    %v207 = vadd.f32 %v175, %v206
    %208 = vmatmul.f32.gmra.mxu0 %v146
    %v209 = vpop.f32.mrf.mxu0
    %v210 = vadd.f32 %v175, %v209
    %211 = vmatmul.f32.gmra.mxu0 %v147
    %v212 = vpop.f32.mrf.mxu0
    %v213 = vadd.f32 %v175, %v212
    %214 = vmatmul.f32.gmra.mxu0 %v148
    %v215 = vpop.f32.mrf.mxu0
    %v216 = vadd.f32 %v175, %v215
    %217 = vmatmul.f32.gmra.mxu0 %v149
    %v218 = vpop.f32.mrf.mxu0
    %v219 = vadd.f32 %v175, %v218
    %220 = vmatmul.f32.gmra.mxu0 %v150
    %v221 = vpop.f32.mrf.mxu0
    %v222 = vadd.f32 %v175, %v221
    %223 = vmatmul.f32.gmra.mxu0 %v151
    %v224 = vpop.f32.mrf.mxu0
    %v225 = vadd.f32 %v175, %v224
    %226 = vmatmul.f32.gmra.mxu0 %v152
    %v227 = vpop.f32.mrf.mxu0
    %v228 = vadd.f32 %v175, %v227
    %229 = vmatmul.f32.gmra.mxu0 %v153
    %v230 = vpop.f32.mrf.mxu0
    %v231 = vadd.f32 %v175, %v230
    %232 = vmatmul.f32.gmra.mxu0 %v154
    %v233 = vpop.f32.mrf.mxu0
    %v234 = vadd.f32 %v175, %v233
    %235 = vmatmul.f32.gmra.mxu0 %v155
    %v236 = vpop.f32.mrf.mxu0
    %v237 = vadd.f32 %v175, %v236
    %238 = vmatmul.f32.gmra.mxu0 %v156
    %v239 = vpop.f32.mrf.mxu0
    %v240 = vadd.f32 %v175, %v239
    %241 = vdwg.mxu0
    %vm242 = vcmask 785408
    %243 = vst.msk [vmem:[#allocation2] sm:$0xff] %vm242, %v195
    %244 = vst.msk [vmem:[#allocation2 + $0x8] sm:$0xff] %vm242, %v198
    %245 = vst.msk [vmem:[#allocation2 + $0x10] sm:$0xff] %vm242, %v201
    %246 = vst.msk [vmem:[#allocation2 + $0x18] sm:$0xff] %vm242, %v204
    %247 = vst.msk [vmem:[#allocation2 + $0x20] sm:$0xff] %vm242, %v207
    %248 = vst.msk [vmem:[#allocation2 + $0x28] sm:$0xff] %vm242, %v210
    %249 = vst.msk [vmem:[#allocation2 + $0x30] sm:$0xff] %vm242, %v213
    %250 = vst.msk [vmem:[#allocation2 + $0x38] sm:$0xff] %vm242, %v216
    %251 = vst.msk [vmem:[#allocation2 + $0x40] sm:$0xff] %vm242, %v219
    %252 = vst.msk [vmem:[#allocation2 + $0x48] sm:$0xff] %vm242, %v222
    %253 = vst.msk [vmem:[#allocation2 + $0x50] sm:$0xff] %vm242, %v225
    %254 = vst.msk [vmem:[#allocation2 + $0x58] sm:$0xff] %vm242, %v228
    %255 = vst.msk [vmem:[#allocation2 + $0x60] sm:$0xff] %vm242, %v231
    %256 = vst.msk [vmem:[#allocation2 + $0x68] sm:$0xff] %vm242, %v234
    %257 = vst.msk [vmem:[#allocation2 + $0x70] sm:$0xff] %vm242, %v237
    %258 = vst.msk [vmem:[#allocation2 + $0x78] sm:$0xff] %vm242, %v240
    %v259 = vld [vmem:[%s3] sm:$0xff]
    %v260 = vld [vmem:[%s3 + $0x8] sm:$0xff]
    %v261 = vld [vmem:[%s3 + $0x10] sm:$0xff]
    %v262 = vld [vmem:[%s3 + $0x18] sm:$0xff]
    %v263 = vld [vmem:[%s5] sm:$0x1]
    %v265 = vperm.slane %v263, 0
    %v266 = vld [vmem:[#allocation2] sm:$0xff]
    %v267 = vld [vmem:[#allocation2 + $0x8] sm:$0xff]
    %vm268 = vcmask 261120
    %v270 = vsel %vm268, 0.0, 0
    %272 = vmatpush.msra.mxu0 0.0
    %273 = vmatpush.msra.mxu0 0.0
    %274 = vmatpush.msra.mxu0 0.0
    %275 = vmatpush.msra.mxu0 0.0
    %276 = vmatpush.msra.mxu0 0.0
    %277 = vmatpush.msra.mxu0 0.0
    %278 = vmatpush.msra.mxu0 0.0
    %279 = vmatpush.msra.mxu0 0.0
    %280 = vmatpush.msra.mxu0 0.0
    %281 = vmatpush.msra.mxu0 0.0
    %282 = vmatpush.msra.mxu0 0.0
    %283 = vmatpush.msra.mxu0 0.0
    %284 = vmatpush.msra.mxu0 %v262
    %285 = vmatpush.msra.mxu0 %v261
    %286 = vmatpush.msra.mxu0 %v260
    %287 = vmatpush.msra.mxu0 %v259
    %288 = vmatmul.f32.gmra.mxu0 %v270
    %v289 = vpop.f32.mrf.mxu0
    %v290 = vadd.f32 0.0, %v289
    %291 = vmatmul.f32.gmra.mxu0 %v270
    %v292 = vpop.f32.mrf.mxu0
    %v293 = vadd.f32 0.0, %v292
    %294 = vdwg.mxu0
    %v295 = vadd.f32 %v266, %v290
    %v296 = vadd.f32 %v267, %v293
    %v297 = vxor.u32 %v295, 2147483648
    %v298 = vxor.u32 %v296, 2147483648
    %v299 = vmul.f32 %v297, 1.442695
    %v300 = vpow.pop %v299
    %v301 = vmul.f32 %v298, 1.442695
    %v302 = vpow.pop %v301
    %v303 = vadd.f32 %v300, 1.0
    %v304 = vadd.f32 %v302, 1.0
    %v305 = vrcp.pop %v303
    %v306 = vmul.f32 %v303, %v305
    %v307 = vsub.f32 1.0, %v306
    %v308 = vmul.f32 %v305, %v307
    %v309 = vadd.f32 %v305, %v308
    %vm310 = vweird.f32 %v303
    %vm311 = vweird.f32 %v305
    %vm312 = vmor %vm310, %vm311
    %v313 = vsel %vm312, %v305, %v309
    %v314 = vand.u32 2147483647, %v303
    %vm315 = vcmp.eq.f32.partialorder %v314, 8.507059e+37
    %v316 = vand.u32 %v303, 2147483648
    %v317 = vor.u32 1.1754944e-38, %v316
    %v318 = vsel %vm315, %v317, %v313
    %v319 = vmul.f32 1.0, %v318
    %v320 = vrcp.pop %v304
    %v321 = vmul.f32 %v304, %v320
    %v322 = vsub.f32 1.0, %v321
    %v323 = vmul.f32 %v320, %v322
    %v324 = vadd.f32 %v320, %v323
    %vm325 = vweird.f32 %v304
    %vm326 = vweird.f32 %v320
    %vm327 = vmor %vm325, %vm326
    %v328 = vsel %vm327, %v320, %v324
    %v329 = vand.u32 2147483647, %v304
    %vm330 = vcmp.eq.f32.partialorder %v329, 8.507059e+37
    %v331 = vand.u32 %v304, 2147483648
    %v332 = vor.u32 1.1754944e-38, %v331
    %v333 = vsel %vm330, %v332, %v328
    %v334 = vmul.f32 1.0, %v333
    %335 = vrot.lane.b32.xlu0 %v265, 64
    %v336 = vpop.permute.xlu0 %335
    %v338 = vadd.f32 %v290, %v336
    %v339 = vadd.f32 %v293, %v336
    %342 = vrot.lane.b32.xlu0 %v338, 64
    %v343 = vpop.permute.xlu0 %342
    %344 = vrot.lane.b32.xlu0 %v339, 64
    %v345 = vpop.permute.xlu0 %344
    %v348 = vmul.f32 %v319, %v343
    %v349 = vmul.f32 %v334, %v345
    %352 = vrot.lane.b32.xlu0 %v348, 64
    %v353 = vpop.permute.xlu0 %352
    %354 = vrot.lane.b32.xlu0 %v349, 64
    %v355 = vpop.permute.xlu0 %354
    %v358 = vadd.f32 %v266, %v353
    %v359 = vadd.f32 %v267, %v355
    %v360 = vtanh.pop %v358
    %v361 = vtanh.pop %v359
    %v362 = vsub.f32 1.0, %v319
    %v363 = vsub.f32 1.0, %v334
    %366 = vrot.lane.b32.xlu0 %v360, 96
    %v367 = vpop.permute.xlu0 %366
    %368 = vrot.lane.b32.xlu0 %v361, 96
    %v369 = vpop.permute.xlu0 %368
    %v372 = vmul.f32 %v362, %v367
    %v373 = vmul.f32 %v363, %v369
    %v374 = vmul.f32 %v319, 0.0
    %v375 = vmul.f32 %v334, 0.0
    %v376 = vadd.f32 %v372, %v374
    %v377 = vadd.f32 %v373, %v375
    %s378 = scalar_lea.vmem [#allocation2], 16
    %v379 = vld [vmem:[%s378] sm:$0xff]
    %v380 = vld [vmem:[%s378 + $0x8] sm:$0xff]
    %383 = vrot.lane.b32.xlu0 %v376, 96
    %v384 = vpop.permute.xlu0 %383
    %385 = vrot.lane.b32.xlu0 %v377, 96
    %v386 = vpop.permute.xlu0 %385
    %v387 = vsel %vm268, %v384, 0
    %v389 = vsel %vm268, %v386, 0
    %391 = vmatpush.msra.mxu0 0.0
    %392 = vmatpush.msra.mxu0 0.0
    %393 = vmatpush.msra.mxu0 0.0
    %394 = vmatpush.msra.mxu0 0.0
    %395 = vmatpush.msra.mxu0 0.0
    %396 = vmatpush.msra.mxu0 0.0
    %397 = vmatpush.msra.mxu0 0.0
    %398 = vmatpush.msra.mxu0 0.0
    %399 = vmatpush.msra.mxu0 0.0
    %400 = vmatpush.msra.mxu0 0.0
    %401 = vmatpush.msra.mxu0 0.0
    %402 = vmatpush.msra.mxu0 0.0
    %403 = vmatpush.msra.mxu0 %v262
    %404 = vmatpush.msra.mxu0 %v261
    %405 = vmatpush.msra.mxu0 %v260
    %406 = vmatpush.msra.mxu0 %v259
    %407 = vmatmul.f32.gmra.mxu0 %v387
    %v408 = vpop.f32.mrf.mxu0
    %v409 = vadd.f32 0.0, %v408
    %410 = vmatmul.f32.gmra.mxu0 %v389
    %v411 = vpop.f32.mrf.mxu0
    %v412 = vadd.f32 0.0, %v411
    %413 = vdwg.mxu0
    %v414 = vadd.f32 %v379, %v409
    %v415 = vadd.f32 %v380, %v412
    %v416 = vxor.u32 %v414, 2147483648
    %v417 = vxor.u32 %v415, 2147483648
    %v418 = vmul.f32 %v416, 1.442695
    %v419 = vpow.pop %v418
    %v420 = vmul.f32 %v417, 1.442695
    %v421 = vpow.pop %v420
    %v422 = vadd.f32 %v419, 1.0
    %v423 = vadd.f32 %v421, 1.0
    %v424 = vrcp.pop %v422
    %v425 = vmul.f32 %v422, %v424
    %v426 = vsub.f32 1.0, %v425
    %v427 = vmul.f32 %v424, %v426
    %v428 = vadd.f32 %v424, %v427
    %vm429 = vweird.f32 %v422
    %vm430 = vweird.f32 %v424
    %vm431 = vmor %vm429, %vm430
    %v432 = vsel %vm431, %v424, %v428
    %v433 = vand.u32 2147483647, %v422
    %vm434 = vcmp.eq.f32.partialorder %v433, 8.507059e+37
    %v435 = vand.u32 %v422, 2147483648
    %v436 = vor.u32 1.1754944e-38, %v435
    %v437 = vsel %vm434, %v436, %v432
    %v438 = vmul.f32 1.0, %v437
    %v439 = vrcp.pop %v423
    %v440 = vmul.f32 %v423, %v439
    %v441 = vsub.f32 1.0, %v440
    %v442 = vmul.f32 %v439, %v441
    %v443 = vadd.f32 %v439, %v442
    %vm444 = vweird.f32 %v423
    %vm445 = vweird.f32 %v439
    %vm446 = vmor %vm444, %vm445
    %v447 = vsel %vm446, %v439, %v443
    %v448 = vand.u32 2147483647, %v423
    %vm449 = vcmp.eq.f32.partialorder %v448, 8.507059e+37
    %v450 = vand.u32 %v423, 2147483648
    %v451 = vor.u32 1.1754944e-38, %v450
    %v452 = vsel %vm449, %v451, %v447
    %v453 = vmul.f32 1.0, %v452
    %v454 = vadd.f32 %v409, %v336
    %v455 = vadd.f32 %v412, %v336
    %458 = vrot.lane.b32.xlu0 %v454, 64
    %v459 = vpop.permute.xlu0 %458
    %460 = vrot.lane.b32.xlu0 %v455, 64
    %v461 = vpop.permute.xlu0 %460
    %v464 = vmul.f32 %v438, %v459
    %v465 = vmul.f32 %v453, %v461
    %468 = vrot.lane.b32.xlu0 %v464, 64
    %v469 = vpop.permute.xlu0 %468
    %470 = vrot.lane.b32.xlu0 %v465, 64
    %v471 = vpop.permute.xlu0 %470
    %v474 = vadd.f32 %v379, %v469
    %v475 = vadd.f32 %v380, %v471
    %v476 = vtanh.pop %v474
    %v477 = vtanh.pop %v475
    %v478 = vsub.f32 1.0, %v438
    %v479 = vsub.f32 1.0, %v453
    %482 = vrot.lane.b32.xlu0 %v476, 96
    %v483 = vpop.permute.xlu0 %482
    %484 = vrot.lane.b32.xlu0 %v477, 96
    %v485 = vpop.permute.xlu0 %484
    %v488 = vmul.f32 %v478, %v483
    %v489 = vmul.f32 %v479, %v485
    %v490 = vmul.f32 %v438, %v376
    %v491 = vmul.f32 %v453, %v377
    %v492 = vadd.f32 %v488, %v490
    %v493 = vadd.f32 %v489, %v491
    %s494 = scalar_lea.vmem [#allocation2], 32
    %v495 = vld [vmem:[%s494] sm:$0xff]
    %v496 = vld [vmem:[%s494 + $0x8] sm:$0xff]
    %499 = vrot.lane.b32.xlu0 %v492, 96
    %v500 = vpop.permute.xlu0 %499
    %501 = vrot.lane.b32.xlu0 %v493, 96
    %v502 = vpop.permute.xlu0 %501
    %v503 = vsel %vm268, %v500, 0
    %v505 = vsel %vm268, %v502, 0
    %507 = vmatpush.msra.mxu0 0.0
    %508 = vmatpush.msra.mxu0 0.0
    %509 = vmatpush.msra.mxu0 0.0
    %510 = vmatpush.msra.mxu0 0.0
    %511 = vmatpush.msra.mxu0 0.0
    %512 = vmatpush.msra.mxu0 0.0
    %513 = vmatpush.msra.mxu0 0.0
    %514 = vmatpush.msra.mxu0 0.0
    %515 = vmatpush.msra.mxu0 0.0
    %516 = vmatpush.msra.mxu0 0.0
    %517 = vmatpush.msra.mxu0 0.0
    %518 = vmatpush.msra.mxu0 0.0
    %519 = vmatpush.msra.mxu0 %v262
    %520 = vmatpush.msra.mxu0 %v261
    %521 = vmatpush.msra.mxu0 %v260
    %522 = vmatpush.msra.mxu0 %v259
    %523 = vmatmul.f32.gmra.mxu0 %v503
    %v524 = vpop.f32.mrf.mxu0
    %v525 = vadd.f32 0.0, %v524
    %526 = vmatmul.f32.gmra.mxu0 %v505
    %v527 = vpop.f32.mrf.mxu0
    %v528 = vadd.f32 0.0, %v527
    %529 = vdwg.mxu0
    %v530 = vadd.f32 %v495, %v525
    %v531 = vadd.f32 %v496, %v528
    %v532 = vxor.u32 %v530, 2147483648
    %v533 = vxor.u32 %v531, 2147483648
    %v534 = vmul.f32 %v532, 1.442695
    %v535 = vpow.pop %v534
    %v536 = vmul.f32 %v533, 1.442695
    %v537 = vpow.pop %v536
    %v538 = vadd.f32 %v535, 1.0
    %v539 = vadd.f32 %v537, 1.0
    %v540 = vrcp.pop %v538
    %v541 = vmul.f32 %v538, %v540
    %v542 = vsub.f32 1.0, %v541
    %v543 = vmul.f32 %v540, %v542
    %v544 = vadd.f32 %v540, %v543
    %vm545 = vweird.f32 %v538
    %vm546 = vweird.f32 %v540
    %vm547 = vmor %vm545, %vm546
    %v548 = vsel %vm547, %v540, %v544
    %v549 = vand.u32 2147483647, %v538
    %vm550 = vcmp.eq.f32.partialorder %v549, 8.507059e+37
    %v551 = vand.u32 %v538, 2147483648
    %v552 = vor.u32 1.1754944e-38, %v551
    %v553 = vsel %vm550, %v552, %v548
    %v554 = vmul.f32 1.0, %v553
    %v555 = vrcp.pop %v539
    %v556 = vmul.f32 %v539, %v555
    %v557 = vsub.f32 1.0, %v556
    %v558 = vmul.f32 %v555, %v557
    %v559 = vadd.f32 %v555, %v558
    %vm560 = vweird.f32 %v539
    %vm561 = vweird.f32 %v555
    %vm562 = vmor %vm560, %vm561
    %v563 = vsel %vm562, %v555, %v559
    %v564 = vand.u32 2147483647, %v539
    %vm565 = vcmp.eq.f32.partialorder %v564, 8.507059e+37
    %v566 = vand.u32 %v539, 2147483648
    %v567 = vor.u32 1.1754944e-38, %v566
    %v568 = vsel %vm565, %v567, %v563
    %v569 = vmul.f32 1.0, %v568
    %v570 = vadd.f32 %v525, %v336
    %v571 = vadd.f32 %v528, %v336
    %574 = vrot.lane.b32.xlu0 %v570, 64
    %v575 = vpop.permute.xlu0 %574
    %576 = vrot.lane.b32.xlu0 %v571, 64
    %v577 = vpop.permute.xlu0 %576
    %v580 = vmul.f32 %v554, %v575
    %v581 = vmul.f32 %v569, %v577
    %584 = vrot.lane.b32.xlu0 %v580, 64
    %v585 = vpop.permute.xlu0 %584
    %586 = vrot.lane.b32.xlu0 %v581, 64
    %v587 = vpop.permute.xlu0 %586
    %v590 = vadd.f32 %v495, %v585
    %v591 = vadd.f32 %v496, %v587
    %v592 = vtanh.pop %v590
    %v593 = vtanh.pop %v591
    %v594 = vsub.f32 1.0, %v554
    %v595 = vsub.f32 1.0, %v569
    %598 = vrot.lane.b32.xlu0 %v592, 96
    %v599 = vpop.permute.xlu0 %598
    %600 = vrot.lane.b32.xlu0 %v593, 96
    %v601 = vpop.permute.xlu0 %600
    %v604 = vmul.f32 %v594, %v599
    %v605 = vmul.f32 %v595, %v601
    %v606 = vmul.f32 %v554, %v492
    %v607 = vmul.f32 %v569, %v493
    %v608 = vadd.f32 %v604, %v606
    %v609 = vadd.f32 %v605, %v607
    %s610 = scalar_lea.vmem [#allocation2], 48
    %v611 = vld [vmem:[%s610] sm:$0xff]
    %v612 = vld [vmem:[%s610 + $0x8] sm:$0xff]
    %615 = vrot.lane.b32.xlu0 %v608, 96
    %v616 = vpop.permute.xlu0 %615
    %617 = vrot.lane.b32.xlu0 %v609, 96
    %v618 = vpop.permute.xlu0 %617
    %v619 = vsel %vm268, %v616, 0
    %v621 = vsel %vm268, %v618, 0
    %623 = vmatpush.msra.mxu0 0.0
    %624 = vmatpush.msra.mxu0 0.0
    %625 = vmatpush.msra.mxu0 0.0
    %626 = vmatpush.msra.mxu0 0.0
    %627 = vmatpush.msra.mxu0 0.0
    %628 = vmatpush.msra.mxu0 0.0
    %629 = vmatpush.msra.mxu0 0.0
    %630 = vmatpush.msra.mxu0 0.0
    %631 = vmatpush.msra.mxu0 0.0
    %632 = vmatpush.msra.mxu0 0.0
    %633 = vmatpush.msra.mxu0 0.0
    %634 = vmatpush.msra.mxu0 0.0
    %635 = vmatpush.msra.mxu0 %v262
    %636 = vmatpush.msra.mxu0 %v261
    %637 = vmatpush.msra.mxu0 %v260
    %638 = vmatpush.msra.mxu0 %v259
    %639 = vmatmul.f32.gmra.mxu0 %v619
    %v640 = vpop.f32.mrf.mxu0
    %v641 = vadd.f32 0.0, %v640
    %642 = vmatmul.f32.gmra.mxu0 %v621
    %v643 = vpop.f32.mrf.mxu0
    %v644 = vadd.f32 0.0, %v643
    %645 = vdwg.mxu0
    %v646 = vadd.f32 %v611, %v641
    %v647 = vadd.f32 %v612, %v644
    %v648 = vxor.u32 %v646, 2147483648
    %v649 = vxor.u32 %v647, 2147483648
    %v650 = vmul.f32 %v648, 1.442695
    %v651 = vpow.pop %v650
    %v652 = vmul.f32 %v649, 1.442695
    %v653 = vpow.pop %v652
    %v654 = vadd.f32 %v651, 1.0
    %v655 = vadd.f32 %v653, 1.0
    %v656 = vrcp.pop %v654
    %v657 = vmul.f32 %v654, %v656
    %v658 = vsub.f32 1.0, %v657
    %v659 = vmul.f32 %v656, %v658
    %v660 = vadd.f32 %v656, %v659
    %vm661 = vweird.f32 %v654
    %vm662 = vweird.f32 %v656
    %vm663 = vmor %vm661, %vm662
    %v664 = vsel %vm663, %v656, %v660
    %v665 = vand.u32 2147483647, %v654
    %vm666 = vcmp.eq.f32.partialorder %v665, 8.507059e+37
    %v667 = vand.u32 %v654, 2147483648
    %v668 = vor.u32 1.1754944e-38, %v667
    %v669 = vsel %vm666, %v668, %v664
    %v670 = vmul.f32 1.0, %v669
    %v671 = vrcp.pop %v655
    %v672 = vmul.f32 %v655, %v671
    %v673 = vsub.f32 1.0, %v672
    %v674 = vmul.f32 %v671, %v673
    %v675 = vadd.f32 %v671, %v674
    %vm676 = vweird.f32 %v655
    %vm677 = vweird.f32 %v671
    %vm678 = vmor %vm676, %vm677
    %v679 = vsel %vm678, %v671, %v675
    %v680 = vand.u32 2147483647, %v655
    %vm681 = vcmp.eq.f32.partialorder %v680, 8.507059e+37
    %v682 = vand.u32 %v655, 2147483648
    %v683 = vor.u32 1.1754944e-38, %v682
    %v684 = vsel %vm681, %v683, %v679
    %v685 = vmul.f32 1.0, %v684
    %v686 = vadd.f32 %v641, %v336
    %v687 = vadd.f32 %v644, %v336
    %690 = vrot.lane.b32.xlu0 %v686, 64
    %v691 = vpop.permute.xlu0 %690
    %692 = vrot.lane.b32.xlu0 %v687, 64
    %v693 = vpop.permute.xlu0 %692
    %v696 = vmul.f32 %v670, %v691
    %v697 = vmul.f32 %v685, %v693
    %700 = vrot.lane.b32.xlu0 %v696, 64
    %v701 = vpop.permute.xlu0 %700
    %702 = vrot.lane.b32.xlu0 %v697, 64
    %v703 = vpop.permute.xlu0 %702
    %v706 = vadd.f32 %v611, %v701
    %v707 = vadd.f32 %v612, %v703
    %v708 = vtanh.pop %v706
    %v709 = vtanh.pop %v707
    %v710 = vsub.f32 1.0, %v670
    %v711 = vsub.f32 1.0, %v685
    %714 = vrot.lane.b32.xlu0 %v708, 96
    %v715 = vpop.permute.xlu0 %714
    %716 = vrot.lane.b32.xlu0 %v709, 96
    %v717 = vpop.permute.xlu0 %716
    %v720 = vmul.f32 %v710, %v715
    %v721 = vmul.f32 %v711, %v717
    %v722 = vmul.f32 %v670, %v608
    %v723 = vmul.f32 %v685, %v609
    %v724 = vadd.f32 %v720, %v722
    %v725 = vadd.f32 %v721, %v723
    %s726 = scalar_lea.vmem [#allocation2], 64
    %v727 = vld [vmem:[%s726] sm:$0xff]
    %v728 = vld [vmem:[%s726 + $0x8] sm:$0xff]
    %731 = vrot.lane.b32.xlu0 %v724, 96
    %v732 = vpop.permute.xlu0 %731
    %733 = vrot.lane.b32.xlu0 %v725, 96
    %v734 = vpop.permute.xlu0 %733
    %v735 = vsel %vm268, %v732, 0
    %v737 = vsel %vm268, %v734, 0
    %739 = vmatpush.msra.mxu0 0.0
    %740 = vmatpush.msra.mxu0 0.0
    %741 = vmatpush.msra.mxu0 0.0
    %742 = vmatpush.msra.mxu0 0.0
    %743 = vmatpush.msra.mxu0 0.0
    %744 = vmatpush.msra.mxu0 0.0
    %745 = vmatpush.msra.mxu0 0.0
    %746 = vmatpush.msra.mxu0 0.0
    %747 = vmatpush.msra.mxu0 0.0
    %748 = vmatpush.msra.mxu0 0.0
    %749 = vmatpush.msra.mxu0 0.0
    %750 = vmatpush.msra.mxu0 0.0
    %751 = vmatpush.msra.mxu0 %v262
    %752 = vmatpush.msra.mxu0 %v261
    %753 = vmatpush.msra.mxu0 %v260
    %754 = vmatpush.msra.mxu0 %v259
    %755 = vmatmul.f32.gmra.mxu0 %v735
    %v756 = vpop.f32.mrf.mxu0
    %v757 = vadd.f32 0.0, %v756
    %758 = vmatmul.f32.gmra.mxu0 %v737
    %v759 = vpop.f32.mrf.mxu0
    %v760 = vadd.f32 0.0, %v759
    %761 = vdwg.mxu0
    %v762 = vadd.f32 %v727, %v757
    %v763 = vadd.f32 %v728, %v760
    %v764 = vxor.u32 %v762, 2147483648
    %v765 = vxor.u32 %v763, 2147483648
    %v766 = vmul.f32 %v764, 1.442695
    %v767 = vpow.pop %v766
    %v768 = vmul.f32 %v765, 1.442695
    %v769 = vpow.pop %v768
    %v770 = vadd.f32 %v767, 1.0
    %v771 = vadd.f32 %v769, 1.0
    %v772 = vrcp.pop %v770
    %v773 = vmul.f32 %v770, %v772
    %v774 = vsub.f32 1.0, %v773
    %v775 = vmul.f32 %v772, %v774
    %v776 = vadd.f32 %v772, %v775
    %vm777 = vweird.f32 %v770
    %vm778 = vweird.f32 %v772
    %vm779 = vmor %vm777, %vm778
    %v780 = vsel %vm779, %v772, %v776
    %v781 = vand.u32 2147483647, %v770
    %vm782 = vcmp.eq.f32.partialorder %v781, 8.507059e+37
    %v783 = vand.u32 %v770, 2147483648
    %v784 = vor.u32 1.1754944e-38, %v783
    %v785 = vsel %vm782, %v784, %v780
    %v786 = vmul.f32 1.0, %v785
    %v787 = vrcp.pop %v771
    %v788 = vmul.f32 %v771, %v787
    %v789 = vsub.f32 1.0, %v788
    %v790 = vmul.f32 %v787, %v789
    %v791 = vadd.f32 %v787, %v790
    %vm792 = vweird.f32 %v771
    %vm793 = vweird.f32 %v787
    %vm794 = vmor %vm792, %vm793
    %v795 = vsel %vm794, %v787, %v791
    %v796 = vand.u32 2147483647, %v771
    %vm797 = vcmp.eq.f32.partialorder %v796, 8.507059e+37
    %v798 = vand.u32 %v771, 2147483648
    %v799 = vor.u32 1.1754944e-38, %v798
    %v800 = vsel %vm797, %v799, %v795
    %v801 = vmul.f32 1.0, %v800
    %v802 = vadd.f32 %v757, %v336
    %v803 = vadd.f32 %v760, %v336
    %806 = vrot.lane.b32.xlu0 %v802, 64
    %v807 = vpop.permute.xlu0 %806
    %808 = vrot.lane.b32.xlu0 %v803, 64
    %v809 = vpop.permute.xlu0 %808
    %v812 = vmul.f32 %v786, %v807
    %v813 = vmul.f32 %v801, %v809
    %816 = vrot.lane.b32.xlu0 %v812, 64
    %v817 = vpop.permute.xlu0 %816
    %818 = vrot.lane.b32.xlu0 %v813, 64
    %v819 = vpop.permute.xlu0 %818
    %v822 = vadd.f32 %v727, %v817
    %v823 = vadd.f32 %v728, %v819
    %v824 = vtanh.pop %v822
    %v825 = vtanh.pop %v823
    %v826 = vsub.f32 1.0, %v786
    %v827 = vsub.f32 1.0, %v801
    %830 = vrot.lane.b32.xlu0 %v824, 96
    %v831 = vpop.permute.xlu0 %830
    %832 = vrot.lane.b32.xlu0 %v825, 96
    %v833 = vpop.permute.xlu0 %832
    %v836 = vmul.f32 %v826, %v831
    %v837 = vmul.f32 %v827, %v833
    %v838 = vmul.f32 %v786, %v724
    %v839 = vmul.f32 %v801, %v725
    %v840 = vadd.f32 %v836, %v838
    %v841 = vadd.f32 %v837, %v839
    %s842 = scalar_lea.vmem [#allocation2], 80
    %v843 = vld [vmem:[%s842] sm:$0xff]
    %v844 = vld [vmem:[%s842 + $0x8] sm:$0xff]
    %847 = vrot.lane.b32.xlu0 %v840, 96
    %v848 = vpop.permute.xlu0 %847
    %849 = vrot.lane.b32.xlu0 %v841, 96
    %v850 = vpop.permute.xlu0 %849
    %v851 = vsel %vm268, %v848, 0
    %v853 = vsel %vm268, %v850, 0
    %855 = vmatpush.msra.mxu0 0.0
    %856 = vmatpush.msra.mxu0 0.0
    %857 = vmatpush.msra.mxu0 0.0
    %858 = vmatpush.msra.mxu0 0.0
    %859 = vmatpush.msra.mxu0 0.0
    %860 = vmatpush.msra.mxu0 0.0
    %861 = vmatpush.msra.mxu0 0.0
    %862 = vmatpush.msra.mxu0 0.0
    %863 = vmatpush.msra.mxu0 0.0
    %864 = vmatpush.msra.mxu0 0.0
    %865 = vmatpush.msra.mxu0 0.0
    %866 = vmatpush.msra.mxu0 0.0
    %867 = vmatpush.msra.mxu0 %v262
    %868 = vmatpush.msra.mxu0 %v261
    %869 = vmatpush.msra.mxu0 %v260
    %870 = vmatpush.msra.mxu0 %v259
    %871 = vmatmul.f32.gmra.mxu0 %v851
    %v872 = vpop.f32.mrf.mxu0
    %v873 = vadd.f32 0.0, %v872
    %874 = vmatmul.f32.gmra.mxu0 %v853
    %v875 = vpop.f32.mrf.mxu0
    %v876 = vadd.f32 0.0, %v875
    %877 = vdwg.mxu0
    %v878 = vadd.f32 %v843, %v873
    %v879 = vadd.f32 %v844, %v876
    %v880 = vxor.u32 %v878, 2147483648
    %v881 = vxor.u32 %v879, 2147483648
    %v882 = vmul.f32 %v880, 1.442695
    %v883 = vpow.pop %v882
    %v884 = vmul.f32 %v881, 1.442695
    %v885 = vpow.pop %v884
    %v886 = vadd.f32 %v883, 1.0
    %v887 = vadd.f32 %v885, 1.0
    %v888 = vrcp.pop %v886
    %v889 = vmul.f32 %v886, %v888
    %v890 = vsub.f32 1.0, %v889
    %v891 = vmul.f32 %v888, %v890
    %v892 = vadd.f32 %v888, %v891
    %vm893 = vweird.f32 %v886
    %vm894 = vweird.f32 %v888
    %vm895 = vmor %vm893, %vm894
    %v896 = vsel %vm895, %v888, %v892
    %v897 = vand.u32 2147483647, %v886
    %vm898 = vcmp.eq.f32.partialorder %v897, 8.507059e+37
    %v899 = vand.u32 %v886, 2147483648
    %v900 = vor.u32 1.1754944e-38, %v899
    %v901 = vsel %vm898, %v900, %v896
    %v902 = vmul.f32 1.0, %v901
    %v903 = vrcp.pop %v887
    %v904 = vmul.f32 %v887, %v903
    %v905 = vsub.f32 1.0, %v904
    %v906 = vmul.f32 %v903, %v905
    %v907 = vadd.f32 %v903, %v906
    %vm908 = vweird.f32 %v887
    %vm909 = vweird.f32 %v903
    %vm910 = vmor %vm908, %vm909
    %v911 = vsel %vm910, %v903, %v907
    %v912 = vand.u32 2147483647, %v887
    %vm913 = vcmp.eq.f32.partialorder %v912, 8.507059e+37
    %v914 = vand.u32 %v887, 2147483648
    %v915 = vor.u32 1.1754944e-38, %v914
    %v916 = vsel %vm913, %v915, %v911
    %v917 = vmul.f32 1.0, %v916
    %v918 = vadd.f32 %v873, %v336
    %v919 = vadd.f32 %v876, %v336
    %922 = vrot.lane.b32.xlu0 %v918, 64
    %v923 = vpop.permute.xlu0 %922
    %924 = vrot.lane.b32.xlu0 %v919, 64
    %v925 = vpop.permute.xlu0 %924
    %v928 = vmul.f32 %v902, %v923
    %v929 = vmul.f32 %v917, %v925
    %932 = vrot.lane.b32.xlu0 %v928, 64
    %v933 = vpop.permute.xlu0 %932
    %934 = vrot.lane.b32.xlu0 %v929, 64
    %v935 = vpop.permute.xlu0 %934
    %v938 = vadd.f32 %v843, %v933
    %v939 = vadd.f32 %v844, %v935
    %v940 = vtanh.pop %v938
    %v941 = vtanh.pop %v939
    %v942 = vsub.f32 1.0, %v902
    %v943 = vsub.f32 1.0, %v917
    %946 = vrot.lane.b32.xlu0 %v940, 96
    %v947 = vpop.permute.xlu0 %946
    %948 = vrot.lane.b32.xlu0 %v941, 96
    %v949 = vpop.permute.xlu0 %948
    %v952 = vmul.f32 %v942, %v947
    %v953 = vmul.f32 %v943, %v949
    %v954 = vmul.f32 %v902, %v840
    %v955 = vmul.f32 %v917, %v841
    %v956 = vadd.f32 %v952, %v954
    %v957 = vadd.f32 %v953, %v955
    %s958 = scalar_lea.vmem [#allocation2], 96
    %v959 = vld [vmem:[%s958] sm:$0xff]
    %v960 = vld [vmem:[%s958 + $0x8] sm:$0xff]
    %963 = vrot.lane.b32.xlu0 %v956, 96
    %v964 = vpop.permute.xlu0 %963
    %965 = vrot.lane.b32.xlu0 %v957, 96
    %v966 = vpop.permute.xlu0 %965
    %v967 = vsel %vm268, %v964, 0
    %v969 = vsel %vm268, %v966, 0
    %971 = vmatpush.msra.mxu0 0.0
    %972 = vmatpush.msra.mxu0 0.0
    %973 = vmatpush.msra.mxu0 0.0
    %974 = vmatpush.msra.mxu0 0.0
    %975 = vmatpush.msra.mxu0 0.0
    %976 = vmatpush.msra.mxu0 0.0
    %977 = vmatpush.msra.mxu0 0.0
    %978 = vmatpush.msra.mxu0 0.0
    %979 = vmatpush.msra.mxu0 0.0
    %980 = vmatpush.msra.mxu0 0.0
    %981 = vmatpush.msra.mxu0 0.0
    %982 = vmatpush.msra.mxu0 0.0
    %983 = vmatpush.msra.mxu0 %v262
    %984 = vmatpush.msra.mxu0 %v261
    %985 = vmatpush.msra.mxu0 %v260
    %986 = vmatpush.msra.mxu0 %v259
    %987 = vmatmul.f32.gmra.mxu0 %v967
    %v988 = vpop.f32.mrf.mxu0
    %v989 = vadd.f32 0.0, %v988
    %990 = vmatmul.f32.gmra.mxu0 %v969
    %v991 = vpop.f32.mrf.mxu0
    %v992 = vadd.f32 0.0, %v991
    %993 = vdwg.mxu0
    %v994 = vadd.f32 %v959, %v989
    %v995 = vadd.f32 %v960, %v992
    %v996 = vxor.u32 %v994, 2147483648
    %v997 = vxor.u32 %v995, 2147483648
    %v998 = vmul.f32 %v996, 1.442695
    %v999 = vpow.pop %v998
    %v1000 = vmul.f32 %v997, 1.442695
    %v1001 = vpow.pop %v1000
    %v1002 = vadd.f32 %v999, 1.0
    %v1003 = vadd.f32 %v1001, 1.0
    %v1004 = vrcp.pop %v1002
    %v1005 = vmul.f32 %v1002, %v1004
    %v1006 = vsub.f32 1.0, %v1005
    %v1007 = vmul.f32 %v1004, %v1006
    %v1008 = vadd.f32 %v1004, %v1007
    %vm1009 = vweird.f32 %v1002
    %vm1010 = vweird.f32 %v1004
    %vm1011 = vmor %vm1009, %vm1010
    %v1012 = vsel %vm1011, %v1004, %v1008
    %v1013 = vand.u32 2147483647, %v1002
    %vm1014 = vcmp.eq.f32.partialorder %v1013, 8.507059e+37
    %v1015 = vand.u32 %v1002, 2147483648
    %v1016 = vor.u32 1.1754944e-38, %v1015
    %v1017 = vsel %vm1014, %v1016, %v1012
    %v1018 = vmul.f32 1.0, %v1017
    %v1019 = vrcp.pop %v1003
    %v1020 = vmul.f32 %v1003, %v1019
    %v1021 = vsub.f32 1.0, %v1020
    %v1022 = vmul.f32 %v1019, %v1021
    %v1023 = vadd.f32 %v1019, %v1022
    %vm1024 = vweird.f32 %v1003
    %vm1025 = vweird.f32 %v1019
    %vm1026 = vmor %vm1024, %vm1025
    %v1027 = vsel %vm1026, %v1019, %v1023
    %v1028 = vand.u32 2147483647, %v1003
    %vm1029 = vcmp.eq.f32.partialorder %v1028, 8.507059e+37
    %v1030 = vand.u32 %v1003, 2147483648
    %v1031 = vor.u32 1.1754944e-38, %v1030
    %v1032 = vsel %vm1029, %v1031, %v1027
    %v1033 = vmul.f32 1.0, %v1032
    %v1034 = vadd.f32 %v989, %v336
    %v1035 = vadd.f32 %v992, %v336
    %1038 = vrot.lane.b32.xlu0 %v1034, 64
    %v1039 = vpop.permute.xlu0 %1038
    %1040 = vrot.lane.b32.xlu0 %v1035, 64
    %v1041 = vpop.permute.xlu0 %1040
    %v1044 = vmul.f32 %v1018, %v1039
    %v1045 = vmul.f32 %v1033, %v1041
    %1048 = vrot.lane.b32.xlu0 %v1044, 64
    %v1049 = vpop.permute.xlu0 %1048
    %1050 = vrot.lane.b32.xlu0 %v1045, 64
    %v1051 = vpop.permute.xlu0 %1050
    %v1054 = vadd.f32 %v959, %v1049
    %v1055 = vadd.f32 %v960, %v1051
    %v1056 = vtanh.pop %v1054
    %v1057 = vtanh.pop %v1055
    %v1058 = vsub.f32 1.0, %v1018
    %v1059 = vsub.f32 1.0, %v1033
    %1062 = vrot.lane.b32.xlu0 %v1056, 96
    %v1063 = vpop.permute.xlu0 %1062
    %1064 = vrot.lane.b32.xlu0 %v1057, 96
    %v1065 = vpop.permute.xlu0 %1064
    %v1068 = vmul.f32 %v1058, %v1063
    %v1069 = vmul.f32 %v1059, %v1065
    %v1070 = vmul.f32 %v1018, %v956
    %v1071 = vmul.f32 %v1033, %v957
    %v1072 = vadd.f32 %v1068, %v1070
    %v1073 = vadd.f32 %v1069, %v1071
    %s1074 = scalar_lea.vmem [#allocation2], 112
    %v1075 = vld [vmem:[%s1074] sm:$0xff]
    %v1076 = vld [vmem:[%s1074 + $0x8] sm:$0xff]
    %1079 = vrot.lane.b32.xlu0 %v1072, 96
    %v1080 = vpop.permute.xlu0 %1079
    %1081 = vrot.lane.b32.xlu0 %v1073, 96
    %v1082 = vpop.permute.xlu0 %1081
    %v1083 = vsel %vm268, %v1080, 0
    %v1085 = vsel %vm268, %v1082, 0
    %1087 = vmatpush.msra.mxu0 0.0
    %1088 = vmatpush.msra.mxu0 0.0
    %1089 = vmatpush.msra.mxu0 0.0
    %1090 = vmatpush.msra.mxu0 0.0
    %1091 = vmatpush.msra.mxu0 0.0
    %1092 = vmatpush.msra.mxu0 0.0
    %1093 = vmatpush.msra.mxu0 0.0
    %1094 = vmatpush.msra.mxu0 0.0
    %1095 = vmatpush.msra.mxu0 0.0
    %1096 = vmatpush.msra.mxu0 0.0
    %1097 = vmatpush.msra.mxu0 0.0
    %1098 = vmatpush.msra.mxu0 0.0
    %1099 = vmatpush.msra.mxu0 %v262
    %1100 = vmatpush.msra.mxu0 %v261
    %1101 = vmatpush.msra.mxu0 %v260
    %1102 = vmatpush.msra.mxu0 %v259
    %1103 = vmatmul.f32.gmra.mxu0 %v1083
    %v1104 = vpop.f32.mrf.mxu0
    %v1105 = vadd.f32 0.0, %v1104
    %1106 = vmatmul.f32.gmra.mxu0 %v1085
    %v1107 = vpop.f32.mrf.mxu0
    %v1108 = vadd.f32 0.0, %v1107
    %1109 = vdwg.mxu0
    %v1110 = vadd.f32 %v1075, %v1105
    %v1111 = vadd.f32 %v1076, %v1108
    %v1112 = vxor.u32 %v1110, 2147483648
    %v1113 = vxor.u32 %v1111, 2147483648
    %v1114 = vmul.f32 %v1112, 1.442695
    %v1115 = vpow.pop %v1114
    %v1116 = vmul.f32 %v1113, 1.442695
    %v1117 = vpow.pop %v1116
    %v1118 = vadd.f32 %v1115, 1.0
    %v1119 = vadd.f32 %v1117, 1.0
    %v1120 = vrcp.pop %v1118
    %v1121 = vmul.f32 %v1118, %v1120
    %v1122 = vsub.f32 1.0, %v1121
    %v1123 = vmul.f32 %v1120, %v1122
    %v1124 = vadd.f32 %v1120, %v1123
    %vm1125 = vweird.f32 %v1118
    %vm1126 = vweird.f32 %v1120
    %vm1127 = vmor %vm1125, %vm1126
    %v1128 = vsel %vm1127, %v1120, %v1124
    %v1129 = vand.u32 2147483647, %v1118
    %vm1130 = vcmp.eq.f32.partialorder %v1129, 8.507059e+37
    %v1131 = vand.u32 %v1118, 2147483648
    %v1132 = vor.u32 1.1754944e-38, %v1131
    %v1133 = vsel %vm1130, %v1132, %v1128
    %v1134 = vmul.f32 1.0, %v1133
    %v1135 = vrcp.pop %v1119
    %v1136 = vmul.f32 %v1119, %v1135
    %v1137 = vsub.f32 1.0, %v1136
    %v1138 = vmul.f32 %v1135, %v1137
    %v1139 = vadd.f32 %v1135, %v1138
    %vm1140 = vweird.f32 %v1119
    %vm1141 = vweird.f32 %v1135
    %vm1142 = vmor %vm1140, %vm1141
    %v1143 = vsel %vm1142, %v1135, %v1139
    %v1144 = vand.u32 2147483647, %v1119
    %vm1145 = vcmp.eq.f32.partialorder %v1144, 8.507059e+37
    %v1146 = vand.u32 %v1119, 2147483648
    %v1147 = vor.u32 1.1754944e-38, %v1146
    %v1148 = vsel %vm1145, %v1147, %v1143
    %v1149 = vmul.f32 1.0, %v1148
    %v1150 = vadd.f32 %v1105, %v336
    %v1151 = vadd.f32 %v1108, %v336
    %1154 = vrot.lane.b32.xlu0 %v1150, 64
    %v1155 = vpop.permute.xlu0 %1154
    %1156 = vrot.lane.b32.xlu0 %v1151, 64
    %v1157 = vpop.permute.xlu0 %1156
    %v1160 = vmul.f32 %v1134, %v1155
    %v1161 = vmul.f32 %v1149, %v1157
    %1164 = vrot.lane.b32.xlu0 %v1160, 64
    %v1165 = vpop.permute.xlu0 %1164
    %1166 = vrot.lane.b32.xlu0 %v1161, 64
    %v1167 = vpop.permute.xlu0 %1166
    %v1170 = vadd.f32 %v1075, %v1165
    %v1171 = vadd.f32 %v1076, %v1167
    %v1172 = vtanh.pop %v1170
    %v1173 = vtanh.pop %v1171
    %v1174 = vsub.f32 1.0, %v1134
    %v1175 = vsub.f32 1.0, %v1149
    %1178 = vrot.lane.b32.xlu0 %v1172, 96
    %v1179 = vpop.permute.xlu0 %1178
    %1180 = vrot.lane.b32.xlu0 %v1173, 96
    %v1181 = vpop.permute.xlu0 %1180
    %v1184 = vmul.f32 %v1174, %v1179
    %v1185 = vmul.f32 %v1175, %v1181
    %v1186 = vmul.f32 %v1134, %v1072
    %v1187 = vmul.f32 %v1149, %v1073
    %v1188 = vadd.f32 %v1184, %v1186
    %v1189 = vadd.f32 %v1185, %v1187
    %v1190 = vld [vmem:[#allocation8] sm:$0xff]
    %v1191 = vld [vmem:[#allocation8 + $0x8] sm:$0xff]
    %v1192 = vld [vmem:[#allocation8 + $0x10] sm:$0xff]
    %v1193 = vld [vmem:[#allocation8 + $0x18] sm:$0xff]
    %v1194 = vld [vmem:[%s7] sm:$0x1]
    %v1196 = vperm.slane %v1194, 0
    %1200 = vrot.lane.b32.xlu0 %v1188, 96
    %v1201 = vpop.permute.xlu0 %1200
    %1202 = vrot.lane.b32.xlu0 %v1189, 96
    %v1203 = vpop.permute.xlu0 %1202
    %v1204 = vsel %vm268, %v1201, 0
    %v1206 = vsel %vm268, %v1203, 0
    %1208 = vmatpush.msra.mxu0 0.0
    %1209 = vmatpush.msra.mxu0 0.0
    %1210 = vmatpush.msra.mxu0 0.0
    %1211 = vmatpush.msra.mxu0 0.0
    %1212 = vmatpush.msra.mxu0 0.0
    %1213 = vmatpush.msra.mxu0 0.0
    %1214 = vmatpush.msra.mxu0 0.0
    %1215 = vmatpush.msra.mxu0 0.0
    %1216 = vmatpush.msra.mxu0 0.0
    %1217 = vmatpush.msra.mxu0 0.0
    %1218 = vmatpush.msra.mxu0 0.0
    %1219 = vmatpush.msra.mxu0 0.0
    %1220 = vmatpush.msra.mxu0 %v1193
    %1221 = vmatpush.msra.mxu0 %v1192
    %1222 = vmatpush.msra.mxu0 %v1191
    %1223 = vmatpush.msra.mxu0 %v1190
    %1224 = vmatmul.f32.gmra.mxu0 %v1204
    %v1225 = vpop.f32.mrf.mxu0
    %v1226 = vadd.f32 %v1196, %v1225
    %1227 = vmatmul.f32.gmra.mxu0 %v1206
    %v1228 = vpop.f32.mrf.mxu0
    %v1229 = vadd.f32 %v1196, %v1228
    %1230 = vdwg.mxu0
    %v1231 = vmax.f32 %v1226, 0.0
    %v1232 = vmax.f32 %v1229, 0.0
    %v1233 = vld [vmem:[#allocation5] sm:$0xff]
    %v1234 = vld [vmem:[#allocation5 + $0x8] sm:$0xff]
    %v1235 = vld [vmem:[#allocation10] sm:$0xff]
    %v1236 = vld [vmem:[#allocation10 + $0x8] sm:$0xff]
    %v1237 = vld [vmem:[#allocation10 + $0x10] sm:$0xff]
    %v1238 = vld [vmem:[%s9] sm:$0x1]
    %v1240 = vperm.slane %v1238, 0
    %vm1242 = vcmask 195584
    %v1244 = vsel %vm1242, %v1233, 0
    %v1247 = vsel %vm1242, %v1234, 0
    %1249 = vmatpush.msra.mxu0 0.0
    %1250 = vmatpush.msra.mxu0 0.0
    %1251 = vmatpush.msra.mxu0 0.0
    %1252 = vmatpush.msra.mxu0 0.0
    %1253 = vmatpush.msra.mxu0 0.0
    %1254 = vmatpush.msra.mxu0 0.0
    %1255 = vmatpush.msra.mxu0 0.0
    %1256 = vmatpush.msra.mxu0 0.0
    %1257 = vmatpush.msra.mxu0 0.0
    %1258 = vmatpush.msra.mxu0 0.0
    %1259 = vmatpush.msra.mxu0 0.0
    %1260 = vmatpush.msra.mxu0 0.0
    %1261 = vmatpush.msra.mxu0 0.0
    %1262 = vmatpush.msra.mxu0 %v1237
    %1263 = vmatpush.msra.mxu0 %v1236
    %1264 = vmatpush.msra.mxu0 %v1235
    %1265 = vmatmul.f32.gmra.mxu0 %v1244
    %v1266 = vpop.f32.mrf.mxu0
    %v1267 = vadd.f32 %v1240, %v1266
    %1268 = vmatmul.f32.gmra.mxu0 %v1247
    %v1269 = vpop.f32.mrf.mxu0
    %v1270 = vadd.f32 %v1240, %v1269
    %1271 = vdwg.mxu0
    %v1272 = vmax.f32 %v1267, 0.0
    %v1273 = vmax.f32 %v1270, 0.0
    %v1274 = vmul.f32 %v1231, %v1272
    %v1275 = vmul.f32 %v1232, %v1273
    %v1276 = vld [vmem:[#allocation11] sm:$0xff]
    %v1277 = vld [vmem:[#allocation11 + $0x8] sm:$0xff]
    %v1278 = vld [vmem:[#allocation11 + $0x10] sm:$0xff]
    %v1279 = vld [vmem:[#allocation11 + $0x18] sm:$0xff]
    %v1280 = vld [vmem:[%s11] sm:$0x1]
    %v1282 = vperm.slane %v1280, 0
    %v1285 = vsel %vm268, %v1274, 0
    %v1288 = vsel %vm268, %v1275, 0
    %1290 = vmatpush.msra.mxu0 0.0
    %1291 = vmatpush.msra.mxu0 0.0
    %1292 = vmatpush.msra.mxu0 0.0
    %1293 = vmatpush.msra.mxu0 0.0
    %1294 = vmatpush.msra.mxu0 0.0
    %1295 = vmatpush.msra.mxu0 0.0
    %1296 = vmatpush.msra.mxu0 0.0
    %1297 = vmatpush.msra.mxu0 0.0
    %1298 = vmatpush.msra.mxu0 0.0
    %1299 = vmatpush.msra.mxu0 0.0
    %1300 = vmatpush.msra.mxu0 0.0
    %1301 = vmatpush.msra.mxu0 0.0
    %1302 = vmatpush.msra.mxu0 %v1279
    %1303 = vmatpush.msra.mxu0 %v1278
    %1304 = vmatpush.msra.mxu0 %v1277
    %1305 = vmatpush.msra.mxu0 %v1276
    %1306 = vmatmul.f32.gmra.mxu0 %v1285
    %v1307 = vpop.f32.mrf.mxu0
    %v1308 = vadd.f32 %v1282, %v1307
    %1309 = vmatmul.f32.gmra.mxu0 %v1288
    %v1310 = vpop.f32.mrf.mxu0
    %v1311 = vadd.f32 %v1282, %v1310
    %1312 = vdwg.mxu0
    %v1313 = vmax.f32 %v1308, 0.0
    %v1314 = vmax.f32 %v1311, 0.0
    %s1315 = smul.u32 64, 1
    %s1316 = sshll.u32 %s1315, 4
    %1317 = dma.done [#allocation4], %s1316
    %v1318 = vld [vmem:[#allocation3] sm:$0xff]
    %v1319 = vld [vmem:[#allocation3 + $0x8] sm:$0xff]
    %v1320 = vld [vmem:[#allocation3 + $0x10] sm:$0xff]
    %v1321 = vld [vmem:[#allocation3 + $0x18] sm:$0xff]
    %v1322 = vld [vmem:[#allocation3 + $0x20] sm:$0xff]
    %v1323 = vld [vmem:[#allocation3 + $0x28] sm:$0xff]
    %v1324 = vld [vmem:[#allocation3 + $0x30] sm:$0xff]
    %v1325 = vld [vmem:[#allocation3 + $0x38] sm:$0xff]
    %v1326 = vld [vmem:[%s12] sm:$0x1]
    %v1328 = vperm.slane %v1326, 0
    %vm1330 = vcmask 523264
    %v1332 = vsel %vm1330, %v1313, 0
    %v1335 = vsel %vm1330, %v1314, 0
    %1337 = vmatpush.msra.mxu0 0.0
    %1338 = vmatpush.msra.mxu0 0.0
    %1339 = vmatpush.msra.mxu0 0.0
    %1340 = vmatpush.msra.mxu0 0.0
    %1341 = vmatpush.msra.mxu0 0.0
    %1342 = vmatpush.msra.mxu0 0.0
    %1343 = vmatpush.msra.mxu0 0.0
    %1344 = vmatpush.msra.mxu0 0.0
    %1345 = vmatpush.msra.mxu0 %v1325
    %1346 = vmatpush.msra.mxu0 %v1324
    %1347 = vmatpush.msra.mxu0 %v1323
    %1348 = vmatpush.msra.mxu0 %v1322
    %1349 = vmatpush.msra.mxu0 %v1321
    %1350 = vmatpush.msra.mxu0 %v1320
    %1351 = vmatpush.msra.mxu0 %v1319
    %1352 = vmatpush.msra.mxu0 %v1318
    %1353 = vmatmul.f32.gmra.mxu0 %v1332
    %v1354 = vpop.f32.mrf.mxu0
    %v1355 = vadd.f32 %v1328, %v1354
    %1356 = vmatmul.f32.gmra.mxu0 %v1335
    %v1357 = vpop.f32.mrf.mxu0
    %v1358 = vadd.f32 %v1328, %v1357
    %1359 = vdwg.mxu0
    %1360 = vst [vmem:[#allocation13] sm:$0xff] %v1355
    %1361 = vst [vmem:[#allocation13 + $0x8] sm:$0xff] %v1358
    // Predicated region
    $region89: #{tpu_custom_call.1} parent=1 // pred_check
      _
    $region90: #{tpu_custom_call.1} parent=1 // pred_check_branch
      %1363 = sbr.rel (0) target = $region92
    $region91: #{tpu_custom_call.1} parent=1 // pred_region
      %1365 = vsyncadd [#allocation7], 0
      %s1366 = sshll.u32 [#allocation13], 4
      %s1367 = int_to_ptr.vmem [resolvable:$true] %s1366
      %s1368 = sshll.u32 %s14, 4
      %s1369 = int_to_ptr.hbm [resolvable:$true] %s1368
      %1374 = dma.vmem_to_hbm [thread:$0]  %s1367, 256, %s1369, [#allocation7], 128, 128, 8
    $region92: #{tpu_custom_call.1} parent=1 // pred_fallthru
      _
    // Predicated region
    $region93: #{tpu_custom_call.1} parent=1 // pred_check
      _
    $region94: #{tpu_custom_call.1} parent=1 // pred_check_branch
      %1376 = sbr.rel (0) target = $region96
    $region95: #{tpu_custom_call.1} parent=1 // pred_region
      %1378 = dma.done [#allocation7], 256
    $region96: #{tpu_custom_call.1} parent=1 // pred_fallthru
      _
    %1379 = vsyncpa [#allocation6], 1
    %1380 = vsyncpa [#allocation9], 1
    %1381 = vsyncpa [#allocation12], 1
    %1382 = vsyncpa [#allocation7], 1
  %1383 = vsyncmov [#allocation4]
  %s1384 = vpop.sfrf %1383
  %p1385 = scmp.eq.s32.totalorder %s1384, 0
  %p1386 = pneg %p1385
  %1388 = shalt.err (%p1386)
  %s1389 = scalar_lea.sflag [#allocation4], 1
  %1390 = vsyncmov %s1389
  %s1391 = vpop.sfrf %1390
  %p1392 = scmp.eq.s32.totalorder %s1391, 0
  %p1393 = pneg %p1392
  %1395 = shalt.err (%p1393)

</llo_original>
